<compile_context>
chip_gen: v7x
topology: tpu7x:2x2x1
jax: 0.10.0
libtpu: 0.0.40
codegen_flags: <defaults>
</compile_context>

<pallas_src>
import math
import jax
import jax.numpy as jnp
from jax import lax
from jax.experimental import pallas as pl
from jax.experimental.pallas import tpu as pltpu


def _make_conv_kernel(kh, kw, Ho, Wo):
    def _conv_kernel(x_ref, w_ref, b_ref, o_ref):
        # x_ref: (1, Cin, Hp, Wp)  zero-padded input for one batch element (NCHW)
        # w_ref: (Cout, kh*kw*Cin) weight slab, rows ordered (dy, dx, cin)
        # b_ref: (Cout, 1)
        # o_ref: (1, Cout, Ho*Wo)  lane-dense output (minor dim multiple of 128)
        x = x_ref[0]                       # (Cin, Hp, Wp)
        Cin = x.shape[0]

        # im2col: stack the kh*kw shifted views into one (kh*kw*Cin, Ho*Wo) patch.
        taps = []
        for dy in range(kh):
            for dx in range(kw):
                taps.append(
                    x[:, dy:dy + Ho, dx:dx + Wo].reshape(Cin, Ho * Wo))
        patch = jnp.concatenate(taps, axis=0)          # (kh*kw*Cin, Ho*Wo)

        # Single MXU pass: (Cout, K) @ (K, Ho*Wo) with f32 accumulation.
        acc = jnp.dot(w_ref[...].astype(jnp.float32),
                      patch.astype(jnp.float32),
                      preferred_element_type=jnp.float32)   # (Cout, Ho*Wo)
        acc = acc + b_ref[...].astype(jnp.float32)           # broadcast (Cout, 1)

        o_ref[...] = acc[None].astype(o_ref.dtype)

    return _conv_kernel


def modified_conv2d(x_nchw, weight_oikk, bias_o):
    """Matches torch.nn.functional.conv2d(x, weight, bias, padding=(kw-1)//2)."""
    N, Cin, H, W = x_nchw.shape
    Cout, Cin_w, kh, kw = weight_oikk.shape
    assert Cin == Cin_w and kh == kw
    pad = (kw - 1) // 2
    Ho = H + 2 * pad - kh + 1
    Wo = W + 2 * pad - kw + 1
    Hp, Wp = H + 2 * pad, W + 2 * pad

    # No layout transpose of the activation — only spatial zero-padding.
    x_pad = jnp.pad(x_nchw, ((0, 0), (0, 0), (pad, pad), (pad, pad)))
    # Pre-flatten the tiny weight to a 2-D slab whose row order (dy, dx, cin)
    # matches the im2col patch built inside the kernel.
    w2d = jnp.transpose(weight_oikk, (0, 2, 3, 1)).reshape(Cout, kh * kw * Cin)
    b2d = bias_o.reshape(Cout, 1)

    out_flat = pl.pallas_call(
        _make_conv_kernel(kh, kw, Ho, Wo),
        out_shape=jax.ShapeDtypeStruct((N, Cout, Ho * Wo), x_nchw.dtype),
        grid_spec=pltpu.PrefetchScalarGridSpec(
            num_scalar_prefetch=0,
            grid=(N,),
            in_specs=[
                pl.BlockSpec((1, Cin, Hp, Wp), lambda n: (n, 0, 0, 0)),
                pl.BlockSpec((Cout, kh * kw * Cin), lambda n: (0, 0)),
                pl.BlockSpec((Cout, 1), lambda n: (0, 0)),
            ],
            out_specs=pl.BlockSpec((1, Cout, Ho * Wo), lambda n: (n, 0, 0)),
        ),
        compiler_params=pltpu.CompilerParams(
            dimension_semantics=("parallel",)),
    )(x_pad, w2d, b2d)

    # Free reshape (contiguous) back to NCHW; no transpose needed.
    return out_flat.reshape(N, Cout, Ho, Wo)


if __name__ == "__main__":
    # Module config (small, consistent with the forward): Cin=4, Cout=8, kernel_width=3.
    in_planes, out_planes, kernel_width = 4, 8, 3
    N, H, W = 2, 16, 16

    key = jax.random.PRNGKey(0)
    kx, kw_key = jax.random.split(key)

    # Deterministic parameter init mirroring __init__:
    #   weight ~ Normal(0, 1/sqrt(in_planes * kernel_width**2)), bias = 0
    std = 1.0 / math.sqrt(in_planes * kernel_width ** 2)
    weight = std * jax.random.normal(
        kw_key, (out_planes, in_planes, kernel_width, kernel_width), jnp.float32)
    bias = jnp.zeros((out_planes,), jnp.float32)

    x = jax.random.normal(kx, (N, in_planes, H, W), jnp.float32)

    out = modified_conv2d(x, weight, bias)
    out = jax.block_until_ready(out)

    # Cross-check against XLA's conv (same semantics as torch conv2d w/ this padding).
    pad = (kernel_width - 1) // 2
    ref = lax.conv_general_dilated(
        x, weight, window_strides=(1, 1), padding=((pad, pad), (pad, pad)),
        dimension_numbers=("NCHW", "OIHW", "NCHW")) + bias.reshape(1, -1, 1, 1)
    assert out.shape == ref.shape
    assert jnp.allclose(out, ref, atol=2e-3, rtol=2e-3)

    print("KERNEL_OK")
</pallas_src>

<mosaic_0001>
module attributes {stable_mosaic.version = 11 : i64} {
  func.func @_conv_kernel(%arg0: i32, %arg1: memref<1x4x18x18xf32, #tpu.memory_space<vmem>>, %arg2: memref<8x36xf32, #tpu.memory_space<vmem>>, %arg3: memref<8x1xf32, #tpu.memory_space<vmem>>, %arg4: memref<1x8x256xf32, #tpu.memory_space<vmem>>) attributes {dimension_semantics = [#tpu.dimension_semantics<parallel>], iteration_bounds = array<i64: 2>, scalar_prefetch = 0 : i64, scratch_operands = 0 : i64, tpu.core_type = #tpu.core_type<tc>, window_params = [{transform_indices = @transform_0, window_bounds = array<i64: 1, 4, 18, 18>}, {pipeline_mode = #tpu.pipeline_mode<synchronous>, transform_indices = @transform_1, window_bounds = array<i64: 8, 36>}, {pipeline_mode = #tpu.pipeline_mode<synchronous>, transform_indices = @transform_2, window_bounds = array<i64: 8, 1>}, {transform_indices = @transform_3, window_bounds = array<i64: 1, 8, 256>}]} {
    %c0 = arith.constant 0 : index
    %c0_0 = arith.constant 0 : index
    %c0_1 = arith.constant 0 : index
    %c0_2 = arith.constant 0 : index
    %0 = vector.load %arg1[%c0, %c0_0, %c0_1, %c0_2] : memref<1x4x18x18xf32, #tpu.memory_space<vmem>>, vector<1x4x18x18xf32>
    %1 = vector.shape_cast %0 : vector<1x4x18x18xf32> to vector<4x18x18xf32>
    %2 = vector.extract_strided_slice %1 {offsets = [0, 0, 0], sizes = [4, 16, 16], strides = [1, 1, 1]} : vector<4x18x18xf32> to vector<4x16x16xf32>
    %3 = vector.shape_cast %2 : vector<4x16x16xf32> to vector<4x256xf32>
    %4 = vector.extract_strided_slice %1 {offsets = [0, 0, 1], sizes = [4, 16, 16], strides = [1, 1, 1]} : vector<4x18x18xf32> to vector<4x16x16xf32>
    %5 = vector.shape_cast %4 : vector<4x16x16xf32> to vector<4x256xf32>
    %6 = vector.extract_strided_slice %1 {offsets = [0, 0, 2], sizes = [4, 16, 16], strides = [1, 1, 1]} : vector<4x18x18xf32> to vector<4x16x16xf32>
    %7 = vector.shape_cast %6 : vector<4x16x16xf32> to vector<4x256xf32>
    %8 = vector.extract_strided_slice %1 {offsets = [0, 1, 0], sizes = [4, 16, 16], strides = [1, 1, 1]} : vector<4x18x18xf32> to vector<4x16x16xf32>
    %9 = vector.shape_cast %8 : vector<4x16x16xf32> to vector<4x256xf32>
    %10 = vector.extract_strided_slice %1 {offsets = [0, 1, 1], sizes = [4, 16, 16], strides = [1, 1, 1]} : vector<4x18x18xf32> to vector<4x16x16xf32>
    %11 = vector.shape_cast %10 : vector<4x16x16xf32> to vector<4x256xf32>
    %12 = vector.extract_strided_slice %1 {offsets = [0, 1, 2], sizes = [4, 16, 16], strides = [1, 1, 1]} : vector<4x18x18xf32> to vector<4x16x16xf32>
    %13 = vector.shape_cast %12 : vector<4x16x16xf32> to vector<4x256xf32>
    %14 = vector.extract_strided_slice %1 {offsets = [0, 2, 0], sizes = [4, 16, 16], strides = [1, 1, 1]} : vector<4x18x18xf32> to vector<4x16x16xf32>
    %15 = vector.shape_cast %14 : vector<4x16x16xf32> to vector<4x256xf32>
    %16 = vector.extract_strided_slice %1 {offsets = [0, 2, 1], sizes = [4, 16, 16], strides = [1, 1, 1]} : vector<4x18x18xf32> to vector<4x16x16xf32>
    %17 = vector.shape_cast %16 : vector<4x16x16xf32> to vector<4x256xf32>
    %18 = vector.extract_strided_slice %1 {offsets = [0, 2, 2], sizes = [4, 16, 16], strides = [1, 1, 1]} : vector<4x18x18xf32> to vector<4x16x16xf32>
    %19 = vector.shape_cast %18 : vector<4x16x16xf32> to vector<4x256xf32>
    %20 = tpu.concatenate %3, %5, %7, %9, %11, %13, %15, %17, %19 in 0 : vector<4x256xf32>, vector<4x256xf32>, vector<4x256xf32>, vector<4x256xf32>, vector<4x256xf32>, vector<4x256xf32>, vector<4x256xf32>, vector<4x256xf32>, vector<4x256xf32> -> vector<36x256xf32>
    %c0_3 = arith.constant 0 : index
    %c0_4 = arith.constant 0 : index
    %21 = vector.load %arg2[%c0_3, %c0_4] : memref<8x36xf32, #tpu.memory_space<vmem>>, vector<8x36xf32>
    %cst = arith.constant dense<0.000000e+00> : vector<8x256xf32>
    %22 = tpu.matmul %21, %20, %cst {dimension_numbers = #tpu.dot_dimension_numbers<[1], [0], [0], [1], [0, 0, 1, 1], [], []>} : vector<8x36xf32>, vector<36x256xf32>, vector<8x256xf32> -> vector<8x256xf32>
    %c0_5 = arith.constant 0 : index
    %c0_6 = arith.constant 0 : index
    %23 = vector.load %arg3[%c0_5, %c0_6] : memref<8x1xf32, #tpu.memory_space<vmem>>, vector<8x1xf32>
    %24 = vector.broadcast %23 : vector<8x1xf32> to vector<8x256xf32>
    %25 = arith.addf %22, %24 : vector<8x256xf32>
    %26 = vector.shape_cast %25 : vector<8x256xf32> to vector<1x8x256xf32>
    %c0_7 = arith.constant 0 : index
    %c0_8 = arith.constant 0 : index
    %c0_9 = arith.constant 0 : index
    %27 = vector.load %arg4[%c0_7, %c0_8, %c0_9] : memref<1x8x256xf32, #tpu.memory_space<vmem>>, vector<1x8x256xf32>
    tpu.vector_store %arg4[%c0_7, %c0_8, %c0_9], %26 {strides = array<i32>} : memref<1x8x256xf32, #tpu.memory_space<vmem>>, vector<1x8x256xf32>,
    return
  }
  func.func @transform_0(%arg0: i32) -> (i32, i32, i32, i32) {
    %c0_i32 = arith.constant 0 : i32
    %c0_i32_0 = arith.constant 0 : i32
    %c0_i32_1 = arith.constant 0 : i32
    %c0_i32_2 = arith.constant 0 : i32
    return %arg0, %c0_i32, %c0_i32_0, %c0_i32_1 : i32, i32, i32, i32
  }
  func.func @transform_1(%arg0: i32) -> (i32, i32) {
    %c0_i32 = arith.constant 0 : i32
    %c0_i32_0 = arith.constant 0 : i32
    %c0_i32_1 = arith.constant 0 : i32
    return %c0_i32, %c0_i32_0 : i32, i32
  }
  func.func @transform_2(%arg0: i32) -> (i32, i32) {
    %c0_i32 = arith.constant 0 : i32
    %c0_i32_0 = arith.constant 0 : i32
    %c0_i32_1 = arith.constant 0 : i32
    return %c0_i32, %c0_i32_0 : i32, i32
  }
  func.func @transform_3(%arg0: i32) -> (i32, i32, i32) {
    %c0_i32 = arith.constant 0 : i32
    %c0_i32_0 = arith.constant 0 : i32
    %c0_i32_1 = arith.constant 0 : i32
    return %arg0, %c0_i32, %c0_i32_0 : i32, i32, i32
  }
}

</mosaic_0001>

<llo_original>
// kernel: tpu_custom_call.1
$region0: #{tpu_custom_call.1}
  #allocation0 [shape = 'u32[]', space=smem, size = 0x4, offset = 0x4, fixed_abs, tag = 'smem constant byte address 0x4 - core index']
  #allocation1 [shape = 'u32[144,128]{1,0:T(1,128)}', space=vmem, size = 0x12000, scoped, tag = 'internal scratch']
  %s0 = inlined_call_operand.vmem [shape: f32[2,4,18,18], index: 0, kind: input, shape index: {}]
  %s1 = inlined_call_operand.vmem [shape: f32[8,36], index: 1, kind: input, shape index: {}]
  %s2 = inlined_call_operand.vmem [shape: f32[8,1], index: 2, kind: input, shape index: {}]
  %s3 = inlined_call_operand.hbm [shape: f32[2,8,256], index: 3, kind: output, shape index: {}]
  %s4 = sld [smem:[#allocation0]]
  $region45: #{tpu_custom_call.1} parent=0
    _
  %s6 = ssub.s32 1, %s4
  %s7 = scalar_select 0, %s6, %s4
  $region1: #{tpu_custom_call.1} parent=0
    #allocation2 [shape = 'u8[16384]{0}', space=vmem, size = 0x4000, scoped, tag = 'output window, operand 0']
    #allocation3 [shape = 's32[2]{0}', space=sflag, size = 0x8, scoped, tag = 'scoped memory for tpu_custom_call.1']
    %8 = vsyncpa [#allocation3], 0
    %s9 = scalar_lea.sflag [#allocation3], 1
    %10 = vsyncpa %s9, 0
    loop: start=0, step=1, limit=4
    $region2: #{tpu_custom_call.1} parent=1 // loop_pre_header
      _
    $region3: #{tpu_custom_call.1} parent=1 // loop_header
      %s12 = sphi 0, %s16
      %p13 = scmp.ge.s32.totalorder %s12, 4
      %s22 = sphi 0, %s24
      %s25 = sphi 0, %s22
      %s26 = sphi 0, %s25
      %s42 = sphi 0, %s26
      %s46 = sphi 0, %s46
      %s48 = sphi 0, %s46
      %s49 = sphi 0, %s48
      %s63 = sphi 0, %s49
      %s67 = sphi 0, %s67
      %s69 = sphi 0, %s67
      %s70 = sphi 0, %s69
      %s84 = sphi 0, %s70
      %s90 = sphi 0, %s92
      %s93 = sphi 0, %s90
      %s94 = sphi 0, %s93
      %s110 = sphi 0, %s94
    $region4: #{tpu_custom_call.1} parent=1 // loop_header_branch
      %15 = sbr.rel (%p13) target = $region8
    $region5: #{tpu_custom_call.1} parent=1 // loop_body
      %s17 = ssub.s32 %s12, 1
      %s18 = ssub.s32 %s12, 2
      %s19 = sadd.s32 %s12, 1
      %s20 = ssub.s32 %s12, %s19
      %p21 = scmp.eq.s32.totalorder %s20, 0
      %s23 = sadd.s32 %s22, 1
      %s24 = scalar_select %p21, %s22, %s23
      %p27 = pneg %p21
      %p28 = scmp.eq.s32.totalorder %s12, 1
      %p29 = por %p27, %p28
      %p30 = scmp.ne.s32.totalorder %s22, %s25
      %p31 = scmp.eq.s32.totalorder %s12, 0
      %p32 = por %p30, %p31
      %p33 = scmp.ne.s32.totalorder %s22, %s25
      %p34 = scmp.eq.s32.totalorder %s17, 1
      %p35 = por %p33, %p34
      %p36 = scmp.ne.s32.totalorder %s25, %s26
      %p37 = scmp.eq.s32.totalorder %s17, 0
      %p38 = por %p36, %p37
      %p39 = scmp.ne.s32.totalorder %s25, %s26
      %p40 = scmp.eq.s32.totalorder %s18, 1
      %p41 = por %p39, %p40
      %p43 = scmp.ne.s32.totalorder %s26, %s42
      %p44 = scmp.eq.s32.totalorder %s18, 0
      %p45 = por %p43, %p44
      %s47 = sadd.s32 %s46, 1
      %p50 = scmp.eq.s32.totalorder %s12, 1
      %p51 = scmp.ne.s32.totalorder %s46, %s48
      %p52 = scmp.eq.s32.totalorder %s12, 0
      %p53 = por %p51, %p52
      %p54 = scmp.ne.s32.totalorder %s46, %s48
      %p55 = scmp.eq.s32.totalorder %s17, 1
      %p56 = por %p54, %p55
      %p57 = scmp.ne.s32.totalorder %s48, %s49
      %p58 = scmp.eq.s32.totalorder %s17, 0
      %p59 = por %p57, %p58
      %p60 = scmp.ne.s32.totalorder %s48, %s49
      %p61 = scmp.eq.s32.totalorder %s18, 1
      %p62 = por %p60, %p61
      %p64 = scmp.ne.s32.totalorder %s49, %s63
      %p65 = scmp.eq.s32.totalorder %s18, 0
      %p66 = por %p64, %p65
      %s68 = sadd.s32 %s67, 1
      %p71 = scmp.eq.s32.totalorder %s12, 1
      %p72 = scmp.ne.s32.totalorder %s67, %s69
      %p73 = scmp.eq.s32.totalorder %s12, 0
      %p74 = por %p72, %p73
      %p75 = scmp.ne.s32.totalorder %s67, %s69
      %p76 = scmp.eq.s32.totalorder %s17, 1
      %p77 = por %p75, %p76
      %p78 = scmp.ne.s32.totalorder %s69, %s70
      %p79 = scmp.eq.s32.totalorder %s17, 0
      %p80 = por %p78, %p79
      %p81 = scmp.ne.s32.totalorder %s69, %s70
      %p82 = scmp.eq.s32.totalorder %s18, 1
      %p83 = por %p81, %p82
      %p85 = scmp.ne.s32.totalorder %s70, %s84
      %p86 = scmp.eq.s32.totalorder %s18, 0
      %p87 = por %p85, %p86
      %s88 = ssub.s32 %s12, %s19
      %p89 = scmp.eq.s32.totalorder %s88, 0
      %s91 = sadd.s32 %s90, 1
      %s92 = scalar_select %p89, %s90, %s91
      %p95 = pneg %p89
      %p96 = scmp.eq.s32.totalorder %s12, 1
      %p97 = por %p95, %p96
      %p98 = scmp.ne.s32.totalorder %s90, %s93
      %p99 = scmp.eq.s32.totalorder %s12, 0
      %p100 = por %p98, %p99
      %p101 = scmp.ne.s32.totalorder %s90, %s93
      %p102 = scmp.eq.s32.totalorder %s17, 1
      %p103 = por %p101, %p102
      %p104 = scmp.ne.s32.totalorder %s93, %s94
      %p105 = scmp.eq.s32.totalorder %s17, 0
      %p106 = por %p104, %p105
      %p107 = scmp.ne.s32.totalorder %s93, %s94
      %p108 = scmp.eq.s32.totalorder %s18, 1
      %p109 = por %p107, %p108
      %p111 = scmp.ne.s32.totalorder %s94, %s110
      %p112 = scmp.eq.s32.totalorder %s18, 0
      %p113 = por %p111, %p112
      %p114 = scmp.le.s32.totalorder 1, %s12
      %p115 = scmp.lt.s32.totalorder %s12, 3
      %p116 = pnand %p114, %p115
      %p117 = pneg %p116
      // Predicated region
      $region9: #{tpu_custom_call.1} parent=5 // pred_check
        _
      $region10: #{tpu_custom_call.1} parent=5 // pred_check_branch
        %119 = sbr.rel (%p116) target = $region12
      $region11: #{tpu_custom_call.1} parent=5 // pred_region
        %s120 = ssub.s32 %s12, 1
        // Predicated region
        $region13: #{tpu_custom_call.1} parent=11 // pred_check
          %p121 = pneg %p59
        $region14: #{tpu_custom_call.1} parent=11 // pred_check_branch
          %123 = sbr.rel (%p121) target = $region16
        $region15: #{tpu_custom_call.1} parent=11 // pred_region
          _
        $region16: #{tpu_custom_call.1} parent=11 // pred_fallthru
          _
        // Predicated region
        $region17: #{tpu_custom_call.1} parent=11 // pred_check
          %p124 = pneg %p80
        $region18: #{tpu_custom_call.1} parent=11 // pred_check_branch
          %126 = sbr.rel (%p124) target = $region20
        $region19: #{tpu_custom_call.1} parent=11 // pred_region
          _
        $region20: #{tpu_custom_call.1} parent=11 // pred_fallthru
          _
      $region12: #{tpu_custom_call.1} parent=5 // pred_fallthru
        _
      %p127 = scmp.lt.s32.totalorder %s12, 2
      // Predicated region
      $region21: #{tpu_custom_call.1} parent=5 // pred_check
        %p128 = pneg %p127
      $region22: #{tpu_custom_call.1} parent=5 // pred_check_branch
        %130 = sbr.rel (%p128) target = $region24
      $region23: #{tpu_custom_call.1} parent=5 // pred_region
        // Predicated region
        $region25: #{tpu_custom_call.1} parent=23 // pred_check
          %p131 = pneg %p32
        $region26: #{tpu_custom_call.1} parent=23 // pred_check_branch
          %133 = sbr.rel (%p131) target = $region28
        $region27: #{tpu_custom_call.1} parent=23 // pred_region
          %p134 = scmp.lt.s32.totalorder %s12, 1
          %s135 = scalar_select %p134, %s12, 1
          %s136 = smul.addr %s135, 12
          %s137 = smul.addr %s136, 8
          %s138 = scalar_lea.vmem %s0, %s137
        $region28: #{tpu_custom_call.1} parent=23 // pred_fallthru
          _
      $region24: #{tpu_custom_call.1} parent=5 // pred_fallthru
        _
      %p139 = scmp.le.s32.totalorder 1, %s12
      %p140 = scmp.lt.s32.totalorder %s12, 3
      %p141 = pnand %p139, %p140
      %p142 = pneg %p141
      // Predicated region
      $region29: #{tpu_custom_call.1} parent=5 // pred_check
        _
      $region30: #{tpu_custom_call.1} parent=5 // pred_check_branch
        %144 = sbr.rel (%p141) target = $region32
      $region31: #{tpu_custom_call.1} parent=5 // pred_region
        %s145 = ssub.s32 %s12, 1
        %p146 = scmp.lt.s32.totalorder %s17, 1
        %s147 = scalar_select %p146, %s17, 1
        %s148 = smul.addr %s147, 12
        %s149 = smul.addr %s148, 8
        %s150 = scalar_lea.vmem %s0, %s149
        %p151 = pneg %p38
        %p152 = pneg %p35
        %p153 = pneg %p59
        %p154 = pneg %p56
        %p155 = pneg %p80
        %p156 = pneg %p77
        %p157 = pneg %p106
        %p158 = pneg %p103
        %s159 = sand.u32 %s93, 1
        %s160 = scalar_lea.sflag [#allocation3], %s159
        %s161 = sand.u32 %s93, 1
        %s162 = smul.addr %s161, 16
        %s163 = scalar_lea.vmem [#allocation2], %s162
        %p164 = scmp.lt.s32.totalorder %s17, 1
        %s165 = scalar_select %p164, %s17, 1
        %s166 = smul.addr %s165, 12
        %s167 = smul.addr %s166, 8
        %s168 = scalar_lea.vmem %s0, %s167
        %v169 = vld [vmem:[%s168] sm:$0xff]
        %v170 = vld [vmem:[%s168 + $0x8] sm:$0xff]
        %v171 = vld [vmem:[%s168 + $0x10] sm:$0x3]
        %v172 = vld [vmem:[%s168 + $0x18] sm:$0xff]
        %v173 = vld [vmem:[%s168 + $0x20] sm:$0xff]
        %v174 = vld [vmem:[%s168 + $0x28] sm:$0x3]
        %v175 = vld [vmem:[%s168 + $0x30] sm:$0xff]
        %v176 = vld [vmem:[%s168 + $0x38] sm:$0xff]
        %v177 = vld [vmem:[%s168 + $0x40] sm:$0x3]
        %v178 = vld [vmem:[%s168 + $0x48] sm:$0xff]
        %v179 = vld [vmem:[%s168 + $0x50] sm:$0xff]
        %v180 = vld [vmem:[%s168 + $0x58] sm:$0x3]
        %v181 = vcombine.low %v169, %v175
        %v182 = vcombine.high %v169, %v175
        %v184 = vunpack.c.l.s4 1983009808
        %v185 = vunpack.c.0.s8 %v184
        %v186 = vlaneseq
        %v187 = vshrl.u32 %v186, 7
        %v188 = vsub.s32 %v185, %v187
        %v189 = vrot.slane %v181, %v188
        %v191 = vunpack.c.l.s4 1983009808
        %v192 = vunpack.c.0.s8 %v191
        %v193 = vlaneseq
        %v194 = vshrl.u32 %v193, 7
        %v195 = vsub.s32 %v192, %v194
        %v196 = vrot.slane %v182, %v195
        %v197 = vcombine.low %v172, %v178
        %v198 = vcombine.high %v172, %v178
        %v200 = vunpack.c.l.s4 1983009808
        %v201 = vunpack.c.0.s8 %v200
        %v202 = vlaneseq
        %v203 = vshrl.u32 %v202, 7
        %v204 = vsub.s32 %v201, %v203
        %v205 = vrot.slane %v197, %v204
        %v207 = vunpack.c.l.s4 1983009808
        %v208 = vunpack.c.0.s8 %v207
        %v209 = vlaneseq
        %v210 = vshrl.u32 %v209, 7
        %v211 = vsub.s32 %v208, %v210
        %v212 = vrot.slane %v198, %v211
        %v213 = vcombine.low %v189, %v205
        %v214 = vcombine.high %v189, %v205
        %v216 = vunpack.c.l.s4 1934713408
        %v217 = vunpack.c.0.s8 %v216
        %v218 = vlaneseq
        %v219 = vshrl.u32 %v218, 7
        %v220 = vsub.s32 %v217, %v219
        %v221 = vrot.slane %v213, %v220
        %v223 = vunpack.c.l.s4 1934713408
        %v224 = vunpack.c.0.s8 %v223
        %v225 = vlaneseq
        %v226 = vshrl.u32 %v225, 7
        %v227 = vsub.s32 %v224, %v226
        %v228 = vrot.slane %v214, %v227
        %v229 = vcombine.low %v196, %v212
        %v230 = vcombine.high %v196, %v212
        %v232 = vunpack.c.l.s4 1934713408
        %v233 = vunpack.c.0.s8 %v232
        %v234 = vlaneseq
        %v235 = vshrl.u32 %v234, 7
        %v236 = vsub.s32 %v233, %v235
        %v237 = vrot.slane %v229, %v236
        %v239 = vunpack.c.l.s4 1934713408
        %v240 = vunpack.c.0.s8 %v239
        %v241 = vlaneseq
        %v242 = vshrl.u32 %v241, 7
        %v243 = vsub.s32 %v240, %v242
        %v244 = vrot.slane %v230, %v243
        %v245 = vcombine.high %v221, 0.0
        %v246 = vcombine.high %v228, 0.0
        %v247 = vcombine.high %v237, 0.0
        %v248 = vcombine.high %v244, 0.0
        %v249 = vcombine.low %v170, %v176
        %v250 = vcombine.high %v170, %v176
        %v252 = vunpack.c.l.s4 1983009808
        %v253 = vunpack.c.0.s8 %v252
        %v254 = vlaneseq
        %v255 = vshrl.u32 %v254, 7
        %v256 = vsub.s32 %v253, %v255
        %v257 = vrot.slane %v249, %v256
        %v259 = vunpack.c.l.s4 1983009808
        %v260 = vunpack.c.0.s8 %v259
        %v261 = vlaneseq
        %v262 = vshrl.u32 %v261, 7
        %v263 = vsub.s32 %v260, %v262
        %v264 = vrot.slane %v250, %v263
        %v265 = vcombine.low %v173, %v179
        %v266 = vcombine.high %v173, %v179
        %v268 = vunpack.c.l.s4 1983009808
        %v269 = vunpack.c.0.s8 %v268
        %v270 = vlaneseq
        %v271 = vshrl.u32 %v270, 7
        %v272 = vsub.s32 %v269, %v271
        %v273 = vrot.slane %v265, %v272
        %v275 = vunpack.c.l.s4 1983009808
        %v276 = vunpack.c.0.s8 %v275
        %v277 = vlaneseq
        %v278 = vshrl.u32 %v277, 7
        %v279 = vsub.s32 %v276, %v278
        %v280 = vrot.slane %v266, %v279
        %v281 = vcombine.low %v257, %v273
        %v282 = vcombine.high %v257, %v273
        %v284 = vunpack.c.l.s4 1934713408
        %v285 = vunpack.c.0.s8 %v284
        %v286 = vlaneseq
        %v287 = vshrl.u32 %v286, 7
        %v288 = vsub.s32 %v285, %v287
        %v289 = vrot.slane %v281, %v288
        %v291 = vunpack.c.l.s4 1934713408
        %v292 = vunpack.c.0.s8 %v291
        %v293 = vlaneseq
        %v294 = vshrl.u32 %v293, 7
        %v295 = vsub.s32 %v292, %v294
        %v296 = vrot.slane %v282, %v295
        %v297 = vcombine.low %v264, %v280
        %v298 = vcombine.high %v264, %v280
        %v300 = vunpack.c.l.s4 1934713408
        %v301 = vunpack.c.0.s8 %v300
        %v302 = vlaneseq
        %v303 = vshrl.u32 %v302, 7
        %v304 = vsub.s32 %v301, %v303
        %v305 = vrot.slane %v297, %v304
        %v307 = vunpack.c.l.s4 1934713408
        %v308 = vunpack.c.0.s8 %v307
        %v309 = vlaneseq
        %v310 = vshrl.u32 %v309, 7
        %v311 = vsub.s32 %v308, %v310
        %v312 = vrot.slane %v298, %v311
        %v313 = vcombine.high %v289, 0.0
        %v314 = vcombine.high %v296, 0.0
        %v315 = vcombine.high %v305, 0.0
        %v316 = vcombine.high %v312, 0.0
        %318 = vrot.lane.b32.xlu0 %v245, 16
        %v319 = vpop.permute.xlu0 %318
        %322 = vrot.lane.b32.xlu0 %v228, 32
        %v323 = vpop.permute.xlu0 %322
        %326 = vrot.lane.b32.xlu0 %v246, 48
        %v327 = vpop.permute.xlu0 %326
        %330 = vrot.lane.b32.xlu0 %v237, 64
        %v331 = vpop.permute.xlu0 %330
        %334 = vrot.lane.b32.xlu0 %v247, 80
        %v335 = vpop.permute.xlu0 %334
        %338 = vrot.lane.b32.xlu0 %v244, 96
        %v339 = vpop.permute.xlu0 %338
        %342 = vrot.lane.b32.xlu0 %v248, 112
        %v343 = vpop.permute.xlu0 %342
        %346 = vrot.lane.b32.xlu0 %v313, 16
        %v347 = vpop.permute.xlu0 %346
        %350 = vrot.lane.b32.xlu0 %v296, 32
        %v351 = vpop.permute.xlu0 %350
        %354 = vrot.lane.b32.xlu0 %v314, 48
        %v355 = vpop.permute.xlu0 %354
        %358 = vrot.lane.b32.xlu0 %v305, 64
        %v359 = vpop.permute.xlu0 %358
        %362 = vrot.lane.b32.xlu0 %v315, 80
        %v363 = vpop.permute.xlu0 %362
        %366 = vrot.lane.b32.xlu0 %v312, 96
        %v367 = vpop.permute.xlu0 %366
        %370 = vrot.lane.b32.xlu0 %v316, 112
        %v371 = vpop.permute.xlu0 %370
        %vm373 = vcmask 130048
        %v374 = vsel %vm373, %v221, %v319
        %vm375 = vcmask 261120
        %v376 = vsel %vm375, %v374, %v323
        %vm377 = vcmask 392192
        %v378 = vsel %vm377, %v376, %v327
        %vm379 = vcmask 523264
        %v380 = vsel %vm379, %v378, %v331
        %vm381 = vcmask 654336
        %v382 = vsel %vm381, %v380, %v335
        %vm383 = vcmask 785408
        %v384 = vsel %vm383, %v382, %v339
        %vm385 = vcmask 916480
        %v386 = vsel %vm385, %v384, %v343
        %v387 = vsel %vm373, %v289, %v347
        %v388 = vsel %vm375, %v387, %v351
        %v389 = vsel %vm377, %v388, %v355
        %v390 = vsel %vm379, %v389, %v359
        %v391 = vsel %vm381, %v390, %v363
        %v392 = vsel %vm383, %v391, %v367
        %v393 = vsel %vm385, %v392, %v371
        %402 = vrot.lane.b32.xlu0 %v169, 127
        %v403 = vpop.permute.xlu0 %402
        %404 = vrot.lane.b32.xlu0 %v170, 127
        %v405 = vpop.permute.xlu0 %404
        %406 = vrot.lane.b32.xlu0 %v172, 127
        %v407 = vpop.permute.xlu0 %406
        %408 = vrot.lane.b32.xlu0 %v173, 127
        %v409 = vpop.permute.xlu0 %408
        %410 = vrot.lane.b32.xlu0 %v175, 127
        %v411 = vpop.permute.xlu0 %410
        %412 = vrot.lane.b32.xlu0 %v176, 127
        %v413 = vpop.permute.xlu0 %412
        %414 = vrot.lane.b32.xlu0 %v178, 127
        %v415 = vpop.permute.xlu0 %414
        %416 = vrot.lane.b32.xlu0 %v179, 127
        %v417 = vpop.permute.xlu0 %416
        %v426 = vcombine.low %v403, %v411
        %v427 = vcombine.high %v403, %v411
        %v429 = vunpack.c.l.s4 1983009808
        %v430 = vunpack.c.0.s8 %v429
        %v431 = vlaneseq
        %v432 = vshrl.u32 %v431, 7
        %v433 = vsub.s32 %v430, %v432
        %v434 = vrot.slane %v426, %v433
        %v436 = vunpack.c.l.s4 1983009808
        %v437 = vunpack.c.0.s8 %v436
        %v438 = vlaneseq
        %v439 = vshrl.u32 %v438, 7
        %v440 = vsub.s32 %v437, %v439
        %v441 = vrot.slane %v427, %v440
        %v442 = vcombine.low %v407, %v415
        %v443 = vcombine.high %v407, %v415
        %v445 = vunpack.c.l.s4 1983009808
        %v446 = vunpack.c.0.s8 %v445
        %v447 = vlaneseq
        %v448 = vshrl.u32 %v447, 7
        %v449 = vsub.s32 %v446, %v448
        %v450 = vrot.slane %v442, %v449
        %v452 = vunpack.c.l.s4 1983009808
        %v453 = vunpack.c.0.s8 %v452
        %v454 = vlaneseq
        %v455 = vshrl.u32 %v454, 7
        %v456 = vsub.s32 %v453, %v455
        %v457 = vrot.slane %v443, %v456
        %v458 = vcombine.low %v434, %v450
        %v459 = vcombine.high %v434, %v450
        %v461 = vunpack.c.l.s4 1934713408
        %v462 = vunpack.c.0.s8 %v461
        %v463 = vlaneseq
        %v464 = vshrl.u32 %v463, 7
        %v465 = vsub.s32 %v462, %v464
        %v466 = vrot.slane %v458, %v465
        %v468 = vunpack.c.l.s4 1934713408
        %v469 = vunpack.c.0.s8 %v468
        %v470 = vlaneseq
        %v471 = vshrl.u32 %v470, 7
        %v472 = vsub.s32 %v469, %v471
        %v473 = vrot.slane %v459, %v472
        %v474 = vcombine.low %v441, %v457
        %v475 = vcombine.high %v441, %v457
        %v477 = vunpack.c.l.s4 1934713408
        %v478 = vunpack.c.0.s8 %v477
        %v479 = vlaneseq
        %v480 = vshrl.u32 %v479, 7
        %v481 = vsub.s32 %v478, %v480
        %v482 = vrot.slane %v474, %v481
        %v484 = vunpack.c.l.s4 1934713408
        %v485 = vunpack.c.0.s8 %v484
        %v486 = vlaneseq
        %v487 = vshrl.u32 %v486, 7
        %v488 = vsub.s32 %v485, %v487
        %v489 = vrot.slane %v475, %v488
        %v490 = vcombine.high %v466, 0.0
        %v491 = vcombine.high %v473, 0.0
        %v492 = vcombine.high %v482, 0.0
        %v493 = vcombine.high %v489, 0.0
        %v494 = vcombine.low %v405, %v413
        %v495 = vcombine.high %v405, %v413
        %v497 = vunpack.c.l.s4 1983009808
        %v498 = vunpack.c.0.s8 %v497
        %v499 = vlaneseq
        %v500 = vshrl.u32 %v499, 7
        %v501 = vsub.s32 %v498, %v500
        %v502 = vrot.slane %v494, %v501
        %v504 = vunpack.c.l.s4 1983009808
        %v505 = vunpack.c.0.s8 %v504
        %v506 = vlaneseq
        %v507 = vshrl.u32 %v506, 7
        %v508 = vsub.s32 %v505, %v507
        %v509 = vrot.slane %v495, %v508
        %v510 = vcombine.low %v409, %v417
        %v511 = vcombine.high %v409, %v417
        %v513 = vunpack.c.l.s4 1983009808
        %v514 = vunpack.c.0.s8 %v513
        %v515 = vlaneseq
        %v516 = vshrl.u32 %v515, 7
        %v517 = vsub.s32 %v514, %v516
        %v518 = vrot.slane %v510, %v517
        %v520 = vunpack.c.l.s4 1983009808
        %v521 = vunpack.c.0.s8 %v520
        %v522 = vlaneseq
        %v523 = vshrl.u32 %v522, 7
        %v524 = vsub.s32 %v521, %v523
        %v525 = vrot.slane %v511, %v524
        %v526 = vcombine.low %v502, %v518
        %v527 = vcombine.high %v502, %v518
        %v529 = vunpack.c.l.s4 1934713408
        %v530 = vunpack.c.0.s8 %v529
        %v531 = vlaneseq
        %v532 = vshrl.u32 %v531, 7
        %v533 = vsub.s32 %v530, %v532
        %v534 = vrot.slane %v526, %v533
        %v536 = vunpack.c.l.s4 1934713408
        %v537 = vunpack.c.0.s8 %v536
        %v538 = vlaneseq
        %v539 = vshrl.u32 %v538, 7
        %v540 = vsub.s32 %v537, %v539
        %v541 = vrot.slane %v527, %v540
        %v542 = vcombine.low %v509, %v525
        %v543 = vcombine.high %v509, %v525
        %v545 = vunpack.c.l.s4 1934713408
        %v546 = vunpack.c.0.s8 %v545
        %v547 = vlaneseq
        %v548 = vshrl.u32 %v547, 7
        %v549 = vsub.s32 %v546, %v548
        %v550 = vrot.slane %v542, %v549
        %v552 = vunpack.c.l.s4 1934713408
        %v553 = vunpack.c.0.s8 %v552
        %v554 = vlaneseq
        %v555 = vshrl.u32 %v554, 7
        %v556 = vsub.s32 %v553, %v555
        %v557 = vrot.slane %v543, %v556
        %v558 = vcombine.high %v534, 0.0
        %v559 = vcombine.high %v541, 0.0
        %v560 = vcombine.high %v550, 0.0
        %v561 = vcombine.high %v557, 0.0
        %563 = vrot.lane.b32.xlu0 %v490, 16
        %v564 = vpop.permute.xlu0 %563
        %567 = vrot.lane.b32.xlu0 %v473, 32
        %v568 = vpop.permute.xlu0 %567
        %571 = vrot.lane.b32.xlu0 %v491, 48
        %v572 = vpop.permute.xlu0 %571
        %575 = vrot.lane.b32.xlu0 %v482, 64
        %v576 = vpop.permute.xlu0 %575
        %579 = vrot.lane.b32.xlu0 %v492, 80
        %v580 = vpop.permute.xlu0 %579
        %583 = vrot.lane.b32.xlu0 %v489, 96
        %v584 = vpop.permute.xlu0 %583
        %587 = vrot.lane.b32.xlu0 %v493, 112
        %v588 = vpop.permute.xlu0 %587
        %591 = vrot.lane.b32.xlu0 %v558, 16
        %v592 = vpop.permute.xlu0 %591
        %595 = vrot.lane.b32.xlu0 %v541, 32
        %v596 = vpop.permute.xlu0 %595
        %599 = vrot.lane.b32.xlu0 %v559, 48
        %v600 = vpop.permute.xlu0 %599
        %603 = vrot.lane.b32.xlu0 %v550, 64
        %v604 = vpop.permute.xlu0 %603
        %607 = vrot.lane.b32.xlu0 %v560, 80
        %v608 = vpop.permute.xlu0 %607
        %611 = vrot.lane.b32.xlu0 %v557, 96
        %v612 = vpop.permute.xlu0 %611
        %615 = vrot.lane.b32.xlu0 %v561, 112
        %v616 = vpop.permute.xlu0 %615
        %v618 = vsel %vm373, %v466, %v564
        %v619 = vsel %vm375, %v618, %v568
        %v620 = vsel %vm377, %v619, %v572
        %v621 = vsel %vm379, %v620, %v576
        %v622 = vsel %vm381, %v621, %v580
        %v623 = vsel %vm383, %v622, %v584
        %v624 = vsel %vm385, %v623, %v588
        %v625 = vsel %vm373, %v534, %v592
        %v626 = vsel %vm375, %v625, %v596
        %v627 = vsel %vm377, %v626, %v600
        %v628 = vsel %vm379, %v627, %v604
        %v629 = vsel %vm381, %v628, %v608
        %v630 = vsel %vm383, %v629, %v612
        %v631 = vsel %vm385, %v630, %v616
        %632 = vrot.lane.b32.xlu0 %v169, 126
        %v633 = vpop.permute.xlu0 %632
        %634 = vrot.lane.b32.xlu0 %v170, 126
        %v635 = vpop.permute.xlu0 %634
        %636 = vrot.lane.b32.xlu0 %v172, 126
        %v637 = vpop.permute.xlu0 %636
        %638 = vrot.lane.b32.xlu0 %v173, 126
        %v639 = vpop.permute.xlu0 %638
        %640 = vrot.lane.b32.xlu0 %v175, 126
        %v641 = vpop.permute.xlu0 %640
        %642 = vrot.lane.b32.xlu0 %v176, 126
        %v643 = vpop.permute.xlu0 %642
        %644 = vrot.lane.b32.xlu0 %v178, 126
        %v645 = vpop.permute.xlu0 %644
        %646 = vrot.lane.b32.xlu0 %v179, 126
        %v647 = vpop.permute.xlu0 %646
        %v656 = vcombine.low %v633, %v641
        %v657 = vcombine.high %v633, %v641
        %v659 = vunpack.c.l.s4 1983009808
        %v660 = vunpack.c.0.s8 %v659
        %v661 = vlaneseq
        %v662 = vshrl.u32 %v661, 7
        %v663 = vsub.s32 %v660, %v662
        %v664 = vrot.slane %v656, %v663
        %v666 = vunpack.c.l.s4 1983009808
        %v667 = vunpack.c.0.s8 %v666
        %v668 = vlaneseq
        %v669 = vshrl.u32 %v668, 7
        %v670 = vsub.s32 %v667, %v669
        %v671 = vrot.slane %v657, %v670
        %v672 = vcombine.low %v637, %v645
        %v673 = vcombine.high %v637, %v645
        %v675 = vunpack.c.l.s4 1983009808
        %v676 = vunpack.c.0.s8 %v675
        %v677 = vlaneseq
        %v678 = vshrl.u32 %v677, 7
        %v679 = vsub.s32 %v676, %v678
        %v680 = vrot.slane %v672, %v679
        %v682 = vunpack.c.l.s4 1983009808
        %v683 = vunpack.c.0.s8 %v682
        %v684 = vlaneseq
        %v685 = vshrl.u32 %v684, 7
        %v686 = vsub.s32 %v683, %v685
        %v687 = vrot.slane %v673, %v686
        %v688 = vcombine.low %v664, %v680
        %v689 = vcombine.high %v664, %v680
        %v691 = vunpack.c.l.s4 1934713408
        %v692 = vunpack.c.0.s8 %v691
        %v693 = vlaneseq
        %v694 = vshrl.u32 %v693, 7
        %v695 = vsub.s32 %v692, %v694
        %v696 = vrot.slane %v688, %v695
        %v698 = vunpack.c.l.s4 1934713408
        %v699 = vunpack.c.0.s8 %v698
        %v700 = vlaneseq
        %v701 = vshrl.u32 %v700, 7
        %v702 = vsub.s32 %v699, %v701
        %v703 = vrot.slane %v689, %v702
        %v704 = vcombine.low %v671, %v687
        %v705 = vcombine.high %v671, %v687
        %v707 = vunpack.c.l.s4 1934713408
        %v708 = vunpack.c.0.s8 %v707
        %v709 = vlaneseq
        %v710 = vshrl.u32 %v709, 7
        %v711 = vsub.s32 %v708, %v710
        %v712 = vrot.slane %v704, %v711
        %v714 = vunpack.c.l.s4 1934713408
        %v715 = vunpack.c.0.s8 %v714
        %v716 = vlaneseq
        %v717 = vshrl.u32 %v716, 7
        %v718 = vsub.s32 %v715, %v717
        %v719 = vrot.slane %v705, %v718
        %v720 = vcombine.high %v696, 0.0
        %v721 = vcombine.high %v703, 0.0
        %v722 = vcombine.high %v712, 0.0
        %v723 = vcombine.high %v719, 0.0
        %v724 = vcombine.low %v635, %v643
        %v725 = vcombine.high %v635, %v643
        %v727 = vunpack.c.l.s4 1983009808
        %v728 = vunpack.c.0.s8 %v727
        %v729 = vlaneseq
        %v730 = vshrl.u32 %v729, 7
        %v731 = vsub.s32 %v728, %v730
        %v732 = vrot.slane %v724, %v731
        %v734 = vunpack.c.l.s4 1983009808
        %v735 = vunpack.c.0.s8 %v734
        %v736 = vlaneseq
        %v737 = vshrl.u32 %v736, 7
        %v738 = vsub.s32 %v735, %v737
        %v739 = vrot.slane %v725, %v738
        %v740 = vcombine.low %v639, %v647
        %v741 = vcombine.high %v639, %v647
        %v743 = vunpack.c.l.s4 1983009808
        %v744 = vunpack.c.0.s8 %v743
        %v745 = vlaneseq
        %v746 = vshrl.u32 %v745, 7
        %v747 = vsub.s32 %v744, %v746
        %v748 = vrot.slane %v740, %v747
        %v750 = vunpack.c.l.s4 1983009808
        %v751 = vunpack.c.0.s8 %v750
        %v752 = vlaneseq
        %v753 = vshrl.u32 %v752, 7
        %v754 = vsub.s32 %v751, %v753
        %v755 = vrot.slane %v741, %v754
        %v756 = vcombine.low %v732, %v748
        %v757 = vcombine.high %v732, %v748
        %v759 = vunpack.c.l.s4 1934713408
        %v760 = vunpack.c.0.s8 %v759
        %v761 = vlaneseq
        %v762 = vshrl.u32 %v761, 7
        %v763 = vsub.s32 %v760, %v762
        %v764 = vrot.slane %v756, %v763
        %v766 = vunpack.c.l.s4 1934713408
        %v767 = vunpack.c.0.s8 %v766
        %v768 = vlaneseq
        %v769 = vshrl.u32 %v768, 7
        %v770 = vsub.s32 %v767, %v769
        %v771 = vrot.slane %v757, %v770
        %v772 = vcombine.low %v739, %v755
        %v773 = vcombine.high %v739, %v755
        %v775 = vunpack.c.l.s4 1934713408
        %v776 = vunpack.c.0.s8 %v775
        %v777 = vlaneseq
        %v778 = vshrl.u32 %v777, 7
        %v779 = vsub.s32 %v776, %v778
        %v780 = vrot.slane %v772, %v779
        %v782 = vunpack.c.l.s4 1934713408
        %v783 = vunpack.c.0.s8 %v782
        %v784 = vlaneseq
        %v785 = vshrl.u32 %v784, 7
        %v786 = vsub.s32 %v783, %v785
        %v787 = vrot.slane %v773, %v786
        %v788 = vcombine.high %v764, 0.0
        %v789 = vcombine.high %v771, 0.0
        %v790 = vcombine.high %v780, 0.0
        %v791 = vcombine.high %v787, 0.0
        %793 = vrot.lane.b32.xlu0 %v720, 16
        %v794 = vpop.permute.xlu0 %793
        %797 = vrot.lane.b32.xlu0 %v703, 32
        %v798 = vpop.permute.xlu0 %797
        %801 = vrot.lane.b32.xlu0 %v721, 48
        %v802 = vpop.permute.xlu0 %801
        %805 = vrot.lane.b32.xlu0 %v712, 64
        %v806 = vpop.permute.xlu0 %805
        %809 = vrot.lane.b32.xlu0 %v722, 80
        %v810 = vpop.permute.xlu0 %809
        %813 = vrot.lane.b32.xlu0 %v719, 96
        %v814 = vpop.permute.xlu0 %813
        %817 = vrot.lane.b32.xlu0 %v723, 112
        %v818 = vpop.permute.xlu0 %817
        %821 = vrot.lane.b32.xlu0 %v788, 16
        %v822 = vpop.permute.xlu0 %821
        %825 = vrot.lane.b32.xlu0 %v771, 32
        %v826 = vpop.permute.xlu0 %825
        %829 = vrot.lane.b32.xlu0 %v789, 48
        %v830 = vpop.permute.xlu0 %829
        %833 = vrot.lane.b32.xlu0 %v780, 64
        %v834 = vpop.permute.xlu0 %833
        %837 = vrot.lane.b32.xlu0 %v790, 80
        %v838 = vpop.permute.xlu0 %837
        %841 = vrot.lane.b32.xlu0 %v787, 96
        %v842 = vpop.permute.xlu0 %841
        %845 = vrot.lane.b32.xlu0 %v791, 112
        %v846 = vpop.permute.xlu0 %845
        %v848 = vsel %vm373, %v696, %v794
        %v849 = vsel %vm375, %v848, %v798
        %v850 = vsel %vm377, %v849, %v802
        %v851 = vsel %vm379, %v850, %v806
        %v852 = vsel %vm381, %v851, %v810
        %v853 = vsel %vm383, %v852, %v814
        %v854 = vsel %vm385, %v853, %v818
        %v855 = vsel %vm373, %v764, %v822
        %v856 = vsel %vm375, %v855, %v826
        %v857 = vsel %vm377, %v856, %v830
        %v858 = vsel %vm379, %v857, %v834
        %v859 = vsel %vm381, %v858, %v838
        %v860 = vsel %vm383, %v859, %v842
        %v861 = vsel %vm385, %v860, %v846
        %vm866 = vcmask 1046528
        %v867 = vrot.slane %v169, 1
        %v868 = vrot.slane %v170, 1
        %v869 = vsel %vm866, %v867, %v868
        %v870 = vrot.slane %v171, 1
        %v871 = vsel %vm866, %v868, %v870
        %v872 = vrot.slane %v172, 1
        %v873 = vrot.slane %v173, 1
        %v874 = vsel %vm866, %v872, %v873
        %v875 = vrot.slane %v174, 1
        %v876 = vsel %vm866, %v873, %v875
        %v877 = vrot.slane %v175, 1
        %v878 = vrot.slane %v176, 1
        %v879 = vsel %vm866, %v877, %v878
        %v880 = vrot.slane %v177, 1
        %v881 = vsel %vm866, %v878, %v880
        %v882 = vrot.slane %v178, 1
        %v883 = vrot.slane %v179, 1
        %v884 = vsel %vm866, %v882, %v883
        %v885 = vrot.slane %v180, 1
        %v886 = vsel %vm866, %v883, %v885
        %v895 = vcombine.low %v869, %v879
        %v896 = vcombine.high %v869, %v879
        %v898 = vunpack.c.l.s4 1983009808
        %v899 = vunpack.c.0.s8 %v898
        %v900 = vlaneseq
        %v901 = vshrl.u32 %v900, 7
        %v902 = vsub.s32 %v899, %v901
        %v903 = vrot.slane %v895, %v902
        %v905 = vunpack.c.l.s4 1983009808
        %v906 = vunpack.c.0.s8 %v905
        %v907 = vlaneseq
        %v908 = vshrl.u32 %v907, 7
        %v909 = vsub.s32 %v906, %v908
        %v910 = vrot.slane %v896, %v909
        %v911 = vcombine.low %v874, %v884
        %v912 = vcombine.high %v874, %v884
        %v914 = vunpack.c.l.s4 1983009808
        %v915 = vunpack.c.0.s8 %v914
        %v916 = vlaneseq
        %v917 = vshrl.u32 %v916, 7
        %v918 = vsub.s32 %v915, %v917
        %v919 = vrot.slane %v911, %v918
        %v921 = vunpack.c.l.s4 1983009808
        %v922 = vunpack.c.0.s8 %v921
        %v923 = vlaneseq
        %v924 = vshrl.u32 %v923, 7
        %v925 = vsub.s32 %v922, %v924
        %v926 = vrot.slane %v912, %v925
        %v927 = vcombine.low %v903, %v919
        %v928 = vcombine.high %v903, %v919
        %v930 = vunpack.c.l.s4 1934713408
        %v931 = vunpack.c.0.s8 %v930
        %v932 = vlaneseq
        %v933 = vshrl.u32 %v932, 7
        %v934 = vsub.s32 %v931, %v933
        %v935 = vrot.slane %v927, %v934
        %v937 = vunpack.c.l.s4 1934713408
        %v938 = vunpack.c.0.s8 %v937
        %v939 = vlaneseq
        %v940 = vshrl.u32 %v939, 7
        %v941 = vsub.s32 %v938, %v940
        %v942 = vrot.slane %v928, %v941
        %v943 = vcombine.low %v910, %v926
        %v944 = vcombine.high %v910, %v926
        %v946 = vunpack.c.l.s4 1934713408
        %v947 = vunpack.c.0.s8 %v946
        %v948 = vlaneseq
        %v949 = vshrl.u32 %v948, 7
        %v950 = vsub.s32 %v947, %v949
        %v951 = vrot.slane %v943, %v950
        %v953 = vunpack.c.l.s4 1934713408
        %v954 = vunpack.c.0.s8 %v953
        %v955 = vlaneseq
        %v956 = vshrl.u32 %v955, 7
        %v957 = vsub.s32 %v954, %v956
        %v958 = vrot.slane %v944, %v957
        %v959 = vcombine.high %v935, 0.0
        %v960 = vcombine.high %v942, 0.0
        %v961 = vcombine.high %v951, 0.0
        %v962 = vcombine.high %v958, 0.0
        %v963 = vcombine.low %v871, %v881
        %v964 = vcombine.high %v871, %v881
        %v966 = vunpack.c.l.s4 1983009808
        %v967 = vunpack.c.0.s8 %v966
        %v968 = vlaneseq
        %v969 = vshrl.u32 %v968, 7
        %v970 = vsub.s32 %v967, %v969
        %v971 = vrot.slane %v963, %v970
        %v973 = vunpack.c.l.s4 1983009808
        %v974 = vunpack.c.0.s8 %v973
        %v975 = vlaneseq
        %v976 = vshrl.u32 %v975, 7
        %v977 = vsub.s32 %v974, %v976
        %v978 = vrot.slane %v964, %v977
        %v979 = vcombine.low %v876, %v886
        %v980 = vcombine.high %v876, %v886
        %v982 = vunpack.c.l.s4 1983009808
        %v983 = vunpack.c.0.s8 %v982
        %v984 = vlaneseq
        %v985 = vshrl.u32 %v984, 7
        %v986 = vsub.s32 %v983, %v985
        %v987 = vrot.slane %v979, %v986
        %v989 = vunpack.c.l.s4 1983009808
        %v990 = vunpack.c.0.s8 %v989
        %v991 = vlaneseq
        %v992 = vshrl.u32 %v991, 7
        %v993 = vsub.s32 %v990, %v992
        %v994 = vrot.slane %v980, %v993
        %v995 = vcombine.low %v971, %v987
        %v996 = vcombine.high %v971, %v987
        %v998 = vunpack.c.l.s4 1934713408
        %v999 = vunpack.c.0.s8 %v998
        %v1000 = vlaneseq
        %v1001 = vshrl.u32 %v1000, 7
        %v1002 = vsub.s32 %v999, %v1001
        %v1003 = vrot.slane %v995, %v1002
        %v1005 = vunpack.c.l.s4 1934713408
        %v1006 = vunpack.c.0.s8 %v1005
        %v1007 = vlaneseq
        %v1008 = vshrl.u32 %v1007, 7
        %v1009 = vsub.s32 %v1006, %v1008
        %v1010 = vrot.slane %v996, %v1009
        %v1011 = vcombine.low %v978, %v994
        %v1012 = vcombine.high %v978, %v994
        %v1014 = vunpack.c.l.s4 1934713408
        %v1015 = vunpack.c.0.s8 %v1014
        %v1016 = vlaneseq
        %v1017 = vshrl.u32 %v1016, 7
        %v1018 = vsub.s32 %v1015, %v1017
        %v1019 = vrot.slane %v1011, %v1018
        %v1021 = vunpack.c.l.s4 1934713408
        %v1022 = vunpack.c.0.s8 %v1021
        %v1023 = vlaneseq
        %v1024 = vshrl.u32 %v1023, 7
        %v1025 = vsub.s32 %v1022, %v1024
        %v1026 = vrot.slane %v1012, %v1025
        %v1027 = vcombine.high %v1003, 0.0
        %v1028 = vcombine.high %v1010, 0.0
        %v1029 = vcombine.high %v1019, 0.0
        %v1030 = vcombine.high %v1026, 0.0
        %1032 = vrot.lane.b32.xlu0 %v959, 16
        %v1033 = vpop.permute.xlu0 %1032
        %1036 = vrot.lane.b32.xlu0 %v942, 32
        %v1037 = vpop.permute.xlu0 %1036
        %1040 = vrot.lane.b32.xlu0 %v960, 48
        %v1041 = vpop.permute.xlu0 %1040
        %1044 = vrot.lane.b32.xlu0 %v951, 64
        %v1045 = vpop.permute.xlu0 %1044
        %1048 = vrot.lane.b32.xlu0 %v961, 80
        %v1049 = vpop.permute.xlu0 %1048
        %1052 = vrot.lane.b32.xlu0 %v958, 96
        %v1053 = vpop.permute.xlu0 %1052
        %1056 = vrot.lane.b32.xlu0 %v962, 112
        %v1057 = vpop.permute.xlu0 %1056
        %1060 = vrot.lane.b32.xlu0 %v1027, 16
        %v1061 = vpop.permute.xlu0 %1060
        %1064 = vrot.lane.b32.xlu0 %v1010, 32
        %v1065 = vpop.permute.xlu0 %1064
        %1068 = vrot.lane.b32.xlu0 %v1028, 48
        %v1069 = vpop.permute.xlu0 %1068
        %1072 = vrot.lane.b32.xlu0 %v1019, 64
        %v1073 = vpop.permute.xlu0 %1072
        %1076 = vrot.lane.b32.xlu0 %v1029, 80
        %v1077 = vpop.permute.xlu0 %1076
        %1080 = vrot.lane.b32.xlu0 %v1026, 96
        %v1081 = vpop.permute.xlu0 %1080
        %1084 = vrot.lane.b32.xlu0 %v1030, 112
        %v1085 = vpop.permute.xlu0 %1084
        %v1087 = vsel %vm373, %v935, %v1033
        %v1088 = vsel %vm375, %v1087, %v1037
        %v1089 = vsel %vm377, %v1088, %v1041
        %v1090 = vsel %vm379, %v1089, %v1045
        %v1091 = vsel %vm381, %v1090, %v1049
        %v1092 = vsel %vm383, %v1091, %v1053
        %v1093 = vsel %vm385, %v1092, %v1057
        %v1094 = vsel %vm373, %v1003, %v1061
        %v1095 = vsel %vm375, %v1094, %v1065
        %v1096 = vsel %vm377, %v1095, %v1069
        %v1097 = vsel %vm379, %v1096, %v1073
        %v1098 = vsel %vm381, %v1097, %v1077
        %v1099 = vsel %vm383, %v1098, %v1081
        %v1100 = vsel %vm385, %v1099, %v1085
        %1101 = vrot.lane.b32.xlu0 %v869, 127
        %v1102 = vpop.permute.xlu0 %1101
        %1103 = vrot.lane.b32.xlu0 %v871, 127
        %v1104 = vpop.permute.xlu0 %1103
        %1105 = vrot.lane.b32.xlu0 %v874, 127
        %v1106 = vpop.permute.xlu0 %1105
        %1107 = vrot.lane.b32.xlu0 %v876, 127
        %v1108 = vpop.permute.xlu0 %1107
        %1109 = vrot.lane.b32.xlu0 %v879, 127
        %v1110 = vpop.permute.xlu0 %1109
        %1111 = vrot.lane.b32.xlu0 %v881, 127
        %v1112 = vpop.permute.xlu0 %1111
        %1113 = vrot.lane.b32.xlu0 %v884, 127
        %v1114 = vpop.permute.xlu0 %1113
        %1115 = vrot.lane.b32.xlu0 %v886, 127
        %v1116 = vpop.permute.xlu0 %1115
        %v1125 = vcombine.low %v1102, %v1110
        %v1126 = vcombine.high %v1102, %v1110
        %v1128 = vunpack.c.l.s4 1983009808
        %v1129 = vunpack.c.0.s8 %v1128
        %v1130 = vlaneseq
        %v1131 = vshrl.u32 %v1130, 7
        %v1132 = vsub.s32 %v1129, %v1131
        %v1133 = vrot.slane %v1125, %v1132
        %v1135 = vunpack.c.l.s4 1983009808
        %v1136 = vunpack.c.0.s8 %v1135
        %v1137 = vlaneseq
        %v1138 = vshrl.u32 %v1137, 7
        %v1139 = vsub.s32 %v1136, %v1138
        %v1140 = vrot.slane %v1126, %v1139
        %v1141 = vcombine.low %v1106, %v1114
        %v1142 = vcombine.high %v1106, %v1114
        %v1144 = vunpack.c.l.s4 1983009808
        %v1145 = vunpack.c.0.s8 %v1144
        %v1146 = vlaneseq
        %v1147 = vshrl.u32 %v1146, 7
        %v1148 = vsub.s32 %v1145, %v1147
        %v1149 = vrot.slane %v1141, %v1148
        %v1151 = vunpack.c.l.s4 1983009808
        %v1152 = vunpack.c.0.s8 %v1151
        %v1153 = vlaneseq
        %v1154 = vshrl.u32 %v1153, 7
        %v1155 = vsub.s32 %v1152, %v1154
        %v1156 = vrot.slane %v1142, %v1155
        %v1157 = vcombine.low %v1133, %v1149
        %v1158 = vcombine.high %v1133, %v1149
        %v1160 = vunpack.c.l.s4 1934713408
        %v1161 = vunpack.c.0.s8 %v1160
        %v1162 = vlaneseq
        %v1163 = vshrl.u32 %v1162, 7
        %v1164 = vsub.s32 %v1161, %v1163
        %v1165 = vrot.slane %v1157, %v1164
        %v1167 = vunpack.c.l.s4 1934713408
        %v1168 = vunpack.c.0.s8 %v1167
        %v1169 = vlaneseq
        %v1170 = vshrl.u32 %v1169, 7
        %v1171 = vsub.s32 %v1168, %v1170
        %v1172 = vrot.slane %v1158, %v1171
        %v1173 = vcombine.low %v1140, %v1156
        %v1174 = vcombine.high %v1140, %v1156
        %v1176 = vunpack.c.l.s4 1934713408
        %v1177 = vunpack.c.0.s8 %v1176
        %v1178 = vlaneseq
        %v1179 = vshrl.u32 %v1178, 7
        %v1180 = vsub.s32 %v1177, %v1179
        %v1181 = vrot.slane %v1173, %v1180
        %v1183 = vunpack.c.l.s4 1934713408
        %v1184 = vunpack.c.0.s8 %v1183
        %v1185 = vlaneseq
        %v1186 = vshrl.u32 %v1185, 7
        %v1187 = vsub.s32 %v1184, %v1186
        %v1188 = vrot.slane %v1174, %v1187
        %v1189 = vcombine.high %v1165, 0.0
        %v1190 = vcombine.high %v1172, 0.0
        %v1191 = vcombine.high %v1181, 0.0
        %v1192 = vcombine.high %v1188, 0.0
        %v1193 = vcombine.low %v1104, %v1112
        %v1194 = vcombine.high %v1104, %v1112
        %v1196 = vunpack.c.l.s4 1983009808
        %v1197 = vunpack.c.0.s8 %v1196
        %v1198 = vlaneseq
        %v1199 = vshrl.u32 %v1198, 7
        %v1200 = vsub.s32 %v1197, %v1199
        %v1201 = vrot.slane %v1193, %v1200
        %v1203 = vunpack.c.l.s4 1983009808
        %v1204 = vunpack.c.0.s8 %v1203
        %v1205 = vlaneseq
        %v1206 = vshrl.u32 %v1205, 7
        %v1207 = vsub.s32 %v1204, %v1206
        %v1208 = vrot.slane %v1194, %v1207
        %v1209 = vcombine.low %v1108, %v1116
        %v1210 = vcombine.high %v1108, %v1116
        %v1212 = vunpack.c.l.s4 1983009808
        %v1213 = vunpack.c.0.s8 %v1212
        %v1214 = vlaneseq
        %v1215 = vshrl.u32 %v1214, 7
        %v1216 = vsub.s32 %v1213, %v1215
        %v1217 = vrot.slane %v1209, %v1216
        %v1219 = vunpack.c.l.s4 1983009808
        %v1220 = vunpack.c.0.s8 %v1219
        %v1221 = vlaneseq
        %v1222 = vshrl.u32 %v1221, 7
        %v1223 = vsub.s32 %v1220, %v1222
        %v1224 = vrot.slane %v1210, %v1223
        %v1225 = vcombine.low %v1201, %v1217
        %v1226 = vcombine.high %v1201, %v1217
        %v1228 = vunpack.c.l.s4 1934713408
        %v1229 = vunpack.c.0.s8 %v1228
        %v1230 = vlaneseq
        %v1231 = vshrl.u32 %v1230, 7
        %v1232 = vsub.s32 %v1229, %v1231
        %v1233 = vrot.slane %v1225, %v1232
        %v1235 = vunpack.c.l.s4 1934713408
        %v1236 = vunpack.c.0.s8 %v1235
        %v1237 = vlaneseq
        %v1238 = vshrl.u32 %v1237, 7
        %v1239 = vsub.s32 %v1236, %v1238
        %v1240 = vrot.slane %v1226, %v1239
        %v1241 = vcombine.low %v1208, %v1224
        %v1242 = vcombine.high %v1208, %v1224
        %v1244 = vunpack.c.l.s4 1934713408
        %v1245 = vunpack.c.0.s8 %v1244
        %v1246 = vlaneseq
        %v1247 = vshrl.u32 %v1246, 7
        %v1248 = vsub.s32 %v1245, %v1247
        %v1249 = vrot.slane %v1241, %v1248
        %v1251 = vunpack.c.l.s4 1934713408
        %v1252 = vunpack.c.0.s8 %v1251
        %v1253 = vlaneseq
        %v1254 = vshrl.u32 %v1253, 7
        %v1255 = vsub.s32 %v1252, %v1254
        %v1256 = vrot.slane %v1242, %v1255
        %v1257 = vcombine.high %v1233, 0.0
        %v1258 = vcombine.high %v1240, 0.0
        %v1259 = vcombine.high %v1249, 0.0
        %v1260 = vcombine.high %v1256, 0.0
        %1262 = vrot.lane.b32.xlu0 %v1189, 16
        %v1263 = vpop.permute.xlu0 %1262
        %1266 = vrot.lane.b32.xlu0 %v1172, 32
        %v1267 = vpop.permute.xlu0 %1266
        %1270 = vrot.lane.b32.xlu0 %v1190, 48
        %v1271 = vpop.permute.xlu0 %1270
        %1274 = vrot.lane.b32.xlu0 %v1181, 64
        %v1275 = vpop.permute.xlu0 %1274
        %1278 = vrot.lane.b32.xlu0 %v1191, 80
        %v1279 = vpop.permute.xlu0 %1278
        %1282 = vrot.lane.b32.xlu0 %v1188, 96
        %v1283 = vpop.permute.xlu0 %1282
        %1286 = vrot.lane.b32.xlu0 %v1192, 112
        %v1287 = vpop.permute.xlu0 %1286
        %1290 = vrot.lane.b32.xlu0 %v1257, 16
        %v1291 = vpop.permute.xlu0 %1290
        %1294 = vrot.lane.b32.xlu0 %v1240, 32
        %v1295 = vpop.permute.xlu0 %1294
        %1298 = vrot.lane.b32.xlu0 %v1258, 48
        %v1299 = vpop.permute.xlu0 %1298
        %1302 = vrot.lane.b32.xlu0 %v1249, 64
        %v1303 = vpop.permute.xlu0 %1302
        %1306 = vrot.lane.b32.xlu0 %v1259, 80
        %v1307 = vpop.permute.xlu0 %1306
        %1310 = vrot.lane.b32.xlu0 %v1256, 96
        %v1311 = vpop.permute.xlu0 %1310
        %1314 = vrot.lane.b32.xlu0 %v1260, 112
        %v1315 = vpop.permute.xlu0 %1314
        %v1317 = vsel %vm373, %v1165, %v1263
        %v1318 = vsel %vm375, %v1317, %v1267
        %v1319 = vsel %vm377, %v1318, %v1271
        %v1320 = vsel %vm379, %v1319, %v1275
        %v1321 = vsel %vm381, %v1320, %v1279
        %v1322 = vsel %vm383, %v1321, %v1283
        %v1323 = vsel %vm385, %v1322, %v1287
        %v1324 = vsel %vm373, %v1233, %v1291
        %v1325 = vsel %vm375, %v1324, %v1295
        %v1326 = vsel %vm377, %v1325, %v1299
        %v1327 = vsel %vm379, %v1326, %v1303
        %v1328 = vsel %vm381, %v1327, %v1307
        %v1329 = vsel %vm383, %v1328, %v1311
        %v1330 = vsel %vm385, %v1329, %v1315
        %1331 = vrot.lane.b32.xlu0 %v869, 126
        %v1332 = vpop.permute.xlu0 %1331
        %1333 = vrot.lane.b32.xlu0 %v871, 126
        %v1334 = vpop.permute.xlu0 %1333
        %1335 = vrot.lane.b32.xlu0 %v874, 126
        %v1336 = vpop.permute.xlu0 %1335
        %1337 = vrot.lane.b32.xlu0 %v876, 126
        %v1338 = vpop.permute.xlu0 %1337
        %1339 = vrot.lane.b32.xlu0 %v879, 126
        %v1340 = vpop.permute.xlu0 %1339
        %1341 = vrot.lane.b32.xlu0 %v881, 126
        %v1342 = vpop.permute.xlu0 %1341
        %1343 = vrot.lane.b32.xlu0 %v884, 126
        %v1344 = vpop.permute.xlu0 %1343
        %1345 = vrot.lane.b32.xlu0 %v886, 126
        %v1346 = vpop.permute.xlu0 %1345
        %v1355 = vcombine.low %v1332, %v1340
        %v1356 = vcombine.high %v1332, %v1340
        %v1358 = vunpack.c.l.s4 1983009808
        %v1359 = vunpack.c.0.s8 %v1358
        %v1360 = vlaneseq
        %v1361 = vshrl.u32 %v1360, 7
        %v1362 = vsub.s32 %v1359, %v1361
        %v1363 = vrot.slane %v1355, %v1362
        %v1365 = vunpack.c.l.s4 1983009808
        %v1366 = vunpack.c.0.s8 %v1365
        %v1367 = vlaneseq
        %v1368 = vshrl.u32 %v1367, 7
        %v1369 = vsub.s32 %v1366, %v1368
        %v1370 = vrot.slane %v1356, %v1369
        %v1371 = vcombine.low %v1336, %v1344
        %v1372 = vcombine.high %v1336, %v1344
        %v1374 = vunpack.c.l.s4 1983009808
        %v1375 = vunpack.c.0.s8 %v1374
        %v1376 = vlaneseq
        %v1377 = vshrl.u32 %v1376, 7
        %v1378 = vsub.s32 %v1375, %v1377
        %v1379 = vrot.slane %v1371, %v1378
        %v1381 = vunpack.c.l.s4 1983009808
        %v1382 = vunpack.c.0.s8 %v1381
        %v1383 = vlaneseq
        %v1384 = vshrl.u32 %v1383, 7
        %v1385 = vsub.s32 %v1382, %v1384
        %v1386 = vrot.slane %v1372, %v1385
        %v1387 = vcombine.low %v1363, %v1379
        %v1388 = vcombine.high %v1363, %v1379
        %v1390 = vunpack.c.l.s4 1934713408
        %v1391 = vunpack.c.0.s8 %v1390
        %v1392 = vlaneseq
        %v1393 = vshrl.u32 %v1392, 7
        %v1394 = vsub.s32 %v1391, %v1393
        %v1395 = vrot.slane %v1387, %v1394
        %v1397 = vunpack.c.l.s4 1934713408
        %v1398 = vunpack.c.0.s8 %v1397
        %v1399 = vlaneseq
        %v1400 = vshrl.u32 %v1399, 7
        %v1401 = vsub.s32 %v1398, %v1400
        %v1402 = vrot.slane %v1388, %v1401
        %v1403 = vcombine.low %v1370, %v1386
        %v1404 = vcombine.high %v1370, %v1386
        %v1406 = vunpack.c.l.s4 1934713408
        %v1407 = vunpack.c.0.s8 %v1406
        %v1408 = vlaneseq
        %v1409 = vshrl.u32 %v1408, 7
        %v1410 = vsub.s32 %v1407, %v1409
        %v1411 = vrot.slane %v1403, %v1410
        %v1413 = vunpack.c.l.s4 1934713408
        %v1414 = vunpack.c.0.s8 %v1413
        %v1415 = vlaneseq
        %v1416 = vshrl.u32 %v1415, 7
        %v1417 = vsub.s32 %v1414, %v1416
        %v1418 = vrot.slane %v1404, %v1417
        %v1419 = vcombine.high %v1395, 0.0
        %v1420 = vcombine.high %v1402, 0.0
        %v1421 = vcombine.high %v1411, 0.0
        %v1422 = vcombine.high %v1418, 0.0
        %v1423 = vcombine.low %v1334, %v1342
        %v1424 = vcombine.high %v1334, %v1342
        %v1426 = vunpack.c.l.s4 1983009808
        %v1427 = vunpack.c.0.s8 %v1426
        %v1428 = vlaneseq
        %v1429 = vshrl.u32 %v1428, 7
        %v1430 = vsub.s32 %v1427, %v1429
        %v1431 = vrot.slane %v1423, %v1430
        %v1433 = vunpack.c.l.s4 1983009808
        %v1434 = vunpack.c.0.s8 %v1433
        %v1435 = vlaneseq
        %v1436 = vshrl.u32 %v1435, 7
        %v1437 = vsub.s32 %v1434, %v1436
        %v1438 = vrot.slane %v1424, %v1437
        %v1439 = vcombine.low %v1338, %v1346
        %v1440 = vcombine.high %v1338, %v1346
        %v1442 = vunpack.c.l.s4 1983009808
        %v1443 = vunpack.c.0.s8 %v1442
        %v1444 = vlaneseq
        %v1445 = vshrl.u32 %v1444, 7
        %v1446 = vsub.s32 %v1443, %v1445
        %v1447 = vrot.slane %v1439, %v1446
        %v1449 = vunpack.c.l.s4 1983009808
        %v1450 = vunpack.c.0.s8 %v1449
        %v1451 = vlaneseq
        %v1452 = vshrl.u32 %v1451, 7
        %v1453 = vsub.s32 %v1450, %v1452
        %v1454 = vrot.slane %v1440, %v1453
        %v1455 = vcombine.low %v1431, %v1447
        %v1456 = vcombine.high %v1431, %v1447
        %v1458 = vunpack.c.l.s4 1934713408
        %v1459 = vunpack.c.0.s8 %v1458
        %v1460 = vlaneseq
        %v1461 = vshrl.u32 %v1460, 7
        %v1462 = vsub.s32 %v1459, %v1461
        %v1463 = vrot.slane %v1455, %v1462
        %v1465 = vunpack.c.l.s4 1934713408
        %v1466 = vunpack.c.0.s8 %v1465
        %v1467 = vlaneseq
        %v1468 = vshrl.u32 %v1467, 7
        %v1469 = vsub.s32 %v1466, %v1468
        %v1470 = vrot.slane %v1456, %v1469
        %v1471 = vcombine.low %v1438, %v1454
        %v1472 = vcombine.high %v1438, %v1454
        %v1474 = vunpack.c.l.s4 1934713408
        %v1475 = vunpack.c.0.s8 %v1474
        %v1476 = vlaneseq
        %v1477 = vshrl.u32 %v1476, 7
        %v1478 = vsub.s32 %v1475, %v1477
        %v1479 = vrot.slane %v1471, %v1478
        %v1481 = vunpack.c.l.s4 1934713408
        %v1482 = vunpack.c.0.s8 %v1481
        %v1483 = vlaneseq
        %v1484 = vshrl.u32 %v1483, 7
        %v1485 = vsub.s32 %v1482, %v1484
        %v1486 = vrot.slane %v1472, %v1485
        %v1487 = vcombine.high %v1463, 0.0
        %v1488 = vcombine.high %v1470, 0.0
        %v1489 = vcombine.high %v1479, 0.0
        %v1490 = vcombine.high %v1486, 0.0
        %1492 = vrot.lane.b32.xlu0 %v1419, 16
        %v1493 = vpop.permute.xlu0 %1492
        %1496 = vrot.lane.b32.xlu0 %v1402, 32
        %v1497 = vpop.permute.xlu0 %1496
        %1500 = vrot.lane.b32.xlu0 %v1420, 48
        %v1501 = vpop.permute.xlu0 %1500
        %1504 = vrot.lane.b32.xlu0 %v1411, 64
        %v1505 = vpop.permute.xlu0 %1504
        %1508 = vrot.lane.b32.xlu0 %v1421, 80
        %v1509 = vpop.permute.xlu0 %1508
        %1512 = vrot.lane.b32.xlu0 %v1418, 96
        %v1513 = vpop.permute.xlu0 %1512
        %1516 = vrot.lane.b32.xlu0 %v1422, 112
        %v1517 = vpop.permute.xlu0 %1516
        %1520 = vrot.lane.b32.xlu0 %v1487, 16
        %v1521 = vpop.permute.xlu0 %1520
        %1524 = vrot.lane.b32.xlu0 %v1470, 32
        %v1525 = vpop.permute.xlu0 %1524
        %1528 = vrot.lane.b32.xlu0 %v1488, 48
        %v1529 = vpop.permute.xlu0 %1528
        %1532 = vrot.lane.b32.xlu0 %v1479, 64
        %v1533 = vpop.permute.xlu0 %1532
        %1536 = vrot.lane.b32.xlu0 %v1489, 80
        %v1537 = vpop.permute.xlu0 %1536
        %1540 = vrot.lane.b32.xlu0 %v1486, 96
        %v1541 = vpop.permute.xlu0 %1540
        %1544 = vrot.lane.b32.xlu0 %v1490, 112
        %v1545 = vpop.permute.xlu0 %1544
        %v1547 = vsel %vm373, %v1395, %v1493
        %v1548 = vsel %vm375, %v1547, %v1497
        %v1549 = vsel %vm377, %v1548, %v1501
        %v1550 = vsel %vm379, %v1549, %v1505
        %v1551 = vsel %vm381, %v1550, %v1509
        %v1552 = vsel %vm383, %v1551, %v1513
        %v1553 = vsel %vm385, %v1552, %v1517
        %v1554 = vsel %vm373, %v1463, %v1521
        %v1555 = vsel %vm375, %v1554, %v1525
        %v1556 = vsel %vm377, %v1555, %v1529
        %v1557 = vsel %vm379, %v1556, %v1533
        %v1558 = vsel %vm381, %v1557, %v1537
        %v1559 = vsel %vm383, %v1558, %v1541
        %v1560 = vsel %vm385, %v1559, %v1545
        %vm1561 = vcmask 1045504
        %v1562 = vrot.slane %v169, 2
        %v1563 = vrot.slane %v170, 2
        %v1564 = vsel %vm1561, %v1562, %v1563
        %v1565 = vrot.slane %v171, 2
        %v1566 = vsel %vm1561, %v1563, %v1565
        %v1567 = vrot.slane %v172, 2
        %v1568 = vrot.slane %v173, 2
        %v1569 = vsel %vm1561, %v1567, %v1568
        %v1570 = vrot.slane %v174, 2
        %v1571 = vsel %vm1561, %v1568, %v1570
        %v1572 = vrot.slane %v175, 2
        %v1573 = vrot.slane %v176, 2
        %v1574 = vsel %vm1561, %v1572, %v1573
        %v1575 = vrot.slane %v177, 2
        %v1576 = vsel %vm1561, %v1573, %v1575
        %v1577 = vrot.slane %v178, 2
        %v1578 = vrot.slane %v179, 2
        %v1579 = vsel %vm1561, %v1577, %v1578
        %v1580 = vrot.slane %v180, 2
        %v1581 = vsel %vm1561, %v1578, %v1580
        %v1590 = vcombine.low %v1564, %v1574
        %v1591 = vcombine.high %v1564, %v1574
        %v1593 = vunpack.c.l.s4 1983009808
        %v1594 = vunpack.c.0.s8 %v1593
        %v1595 = vlaneseq
        %v1596 = vshrl.u32 %v1595, 7
        %v1597 = vsub.s32 %v1594, %v1596
        %v1598 = vrot.slane %v1590, %v1597
        %v1600 = vunpack.c.l.s4 1983009808
        %v1601 = vunpack.c.0.s8 %v1600
        %v1602 = vlaneseq
        %v1603 = vshrl.u32 %v1602, 7
        %v1604 = vsub.s32 %v1601, %v1603
        %v1605 = vrot.slane %v1591, %v1604
        %v1606 = vcombine.low %v1569, %v1579
        %v1607 = vcombine.high %v1569, %v1579
        %v1609 = vunpack.c.l.s4 1983009808
        %v1610 = vunpack.c.0.s8 %v1609
        %v1611 = vlaneseq
        %v1612 = vshrl.u32 %v1611, 7
        %v1613 = vsub.s32 %v1610, %v1612
        %v1614 = vrot.slane %v1606, %v1613
        %v1616 = vunpack.c.l.s4 1983009808
        %v1617 = vunpack.c.0.s8 %v1616
        %v1618 = vlaneseq
        %v1619 = vshrl.u32 %v1618, 7
        %v1620 = vsub.s32 %v1617, %v1619
        %v1621 = vrot.slane %v1607, %v1620
        %v1622 = vcombine.low %v1598, %v1614
        %v1623 = vcombine.high %v1598, %v1614
        %v1625 = vunpack.c.l.s4 1934713408
        %v1626 = vunpack.c.0.s8 %v1625
        %v1627 = vlaneseq
        %v1628 = vshrl.u32 %v1627, 7
        %v1629 = vsub.s32 %v1626, %v1628
        %v1630 = vrot.slane %v1622, %v1629
        %v1632 = vunpack.c.l.s4 1934713408
        %v1633 = vunpack.c.0.s8 %v1632
        %v1634 = vlaneseq
        %v1635 = vshrl.u32 %v1634, 7
        %v1636 = vsub.s32 %v1633, %v1635
        %v1637 = vrot.slane %v1623, %v1636
        %v1638 = vcombine.low %v1605, %v1621
        %v1639 = vcombine.high %v1605, %v1621
        %v1641 = vunpack.c.l.s4 1934713408
        %v1642 = vunpack.c.0.s8 %v1641
        %v1643 = vlaneseq
        %v1644 = vshrl.u32 %v1643, 7
        %v1645 = vsub.s32 %v1642, %v1644
        %v1646 = vrot.slane %v1638, %v1645
        %v1648 = vunpack.c.l.s4 1934713408
        %v1649 = vunpack.c.0.s8 %v1648
        %v1650 = vlaneseq
        %v1651 = vshrl.u32 %v1650, 7
        %v1652 = vsub.s32 %v1649, %v1651
        %v1653 = vrot.slane %v1639, %v1652
        %v1654 = vcombine.high %v1630, 0.0
        %v1655 = vcombine.high %v1637, 0.0
        %v1656 = vcombine.high %v1646, 0.0
        %v1657 = vcombine.high %v1653, 0.0
        %v1658 = vcombine.low %v1566, %v1576
        %v1659 = vcombine.high %v1566, %v1576
        %v1661 = vunpack.c.l.s4 1983009808
        %v1662 = vunpack.c.0.s8 %v1661
        %v1663 = vlaneseq
        %v1664 = vshrl.u32 %v1663, 7
        %v1665 = vsub.s32 %v1662, %v1664
        %v1666 = vrot.slane %v1658, %v1665
        %v1668 = vunpack.c.l.s4 1983009808
        %v1669 = vunpack.c.0.s8 %v1668
        %v1670 = vlaneseq
        %v1671 = vshrl.u32 %v1670, 7
        %v1672 = vsub.s32 %v1669, %v1671
        %v1673 = vrot.slane %v1659, %v1672
        %v1674 = vcombine.low %v1571, %v1581
        %v1675 = vcombine.high %v1571, %v1581
        %v1677 = vunpack.c.l.s4 1983009808
        %v1678 = vunpack.c.0.s8 %v1677
        %v1679 = vlaneseq
        %v1680 = vshrl.u32 %v1679, 7
        %v1681 = vsub.s32 %v1678, %v1680
        %v1682 = vrot.slane %v1674, %v1681
        %v1684 = vunpack.c.l.s4 1983009808
        %v1685 = vunpack.c.0.s8 %v1684
        %v1686 = vlaneseq
        %v1687 = vshrl.u32 %v1686, 7
        %v1688 = vsub.s32 %v1685, %v1687
        %v1689 = vrot.slane %v1675, %v1688
        %v1690 = vcombine.low %v1666, %v1682
        %v1691 = vcombine.high %v1666, %v1682
        %v1693 = vunpack.c.l.s4 1934713408
        %v1694 = vunpack.c.0.s8 %v1693
        %v1695 = vlaneseq
        %v1696 = vshrl.u32 %v1695, 7
        %v1697 = vsub.s32 %v1694, %v1696
        %v1698 = vrot.slane %v1690, %v1697
        %v1700 = vunpack.c.l.s4 1934713408
        %v1701 = vunpack.c.0.s8 %v1700
        %v1702 = vlaneseq
        %v1703 = vshrl.u32 %v1702, 7
        %v1704 = vsub.s32 %v1701, %v1703
        %v1705 = vrot.slane %v1691, %v1704
        %v1706 = vcombine.low %v1673, %v1689
        %v1707 = vcombine.high %v1673, %v1689
        %v1709 = vunpack.c.l.s4 1934713408
        %v1710 = vunpack.c.0.s8 %v1709
        %v1711 = vlaneseq
        %v1712 = vshrl.u32 %v1711, 7
        %v1713 = vsub.s32 %v1710, %v1712
        %v1714 = vrot.slane %v1706, %v1713
        %v1716 = vunpack.c.l.s4 1934713408
        %v1717 = vunpack.c.0.s8 %v1716
        %v1718 = vlaneseq
        %v1719 = vshrl.u32 %v1718, 7
        %v1720 = vsub.s32 %v1717, %v1719
        %v1721 = vrot.slane %v1707, %v1720
        %v1722 = vcombine.high %v1698, 0.0
        %v1723 = vcombine.high %v1705, 0.0
        %v1724 = vcombine.high %v1714, 0.0
        %v1725 = vcombine.high %v1721, 0.0
        %1727 = vrot.lane.b32.xlu0 %v1654, 16
        %v1728 = vpop.permute.xlu0 %1727
        %1731 = vrot.lane.b32.xlu0 %v1637, 32
        %v1732 = vpop.permute.xlu0 %1731
        %1735 = vrot.lane.b32.xlu0 %v1655, 48
        %v1736 = vpop.permute.xlu0 %1735
        %1739 = vrot.lane.b32.xlu0 %v1646, 64
        %v1740 = vpop.permute.xlu0 %1739
        %1743 = vrot.lane.b32.xlu0 %v1656, 80
        %v1744 = vpop.permute.xlu0 %1743
        %1747 = vrot.lane.b32.xlu0 %v1653, 96
        %v1748 = vpop.permute.xlu0 %1747
        %1751 = vrot.lane.b32.xlu0 %v1657, 112
        %v1752 = vpop.permute.xlu0 %1751
        %1755 = vrot.lane.b32.xlu0 %v1722, 16
        %v1756 = vpop.permute.xlu0 %1755
        %1759 = vrot.lane.b32.xlu0 %v1705, 32
        %v1760 = vpop.permute.xlu0 %1759
        %1763 = vrot.lane.b32.xlu0 %v1723, 48
        %v1764 = vpop.permute.xlu0 %1763
        %1767 = vrot.lane.b32.xlu0 %v1714, 64
        %v1768 = vpop.permute.xlu0 %1767
        %1771 = vrot.lane.b32.xlu0 %v1724, 80
        %v1772 = vpop.permute.xlu0 %1771
        %1775 = vrot.lane.b32.xlu0 %v1721, 96
        %v1776 = vpop.permute.xlu0 %1775
        %1779 = vrot.lane.b32.xlu0 %v1725, 112
        %v1780 = vpop.permute.xlu0 %1779
        %v1782 = vsel %vm373, %v1630, %v1728
        %v1783 = vsel %vm375, %v1782, %v1732
        %v1784 = vsel %vm377, %v1783, %v1736
        %v1785 = vsel %vm379, %v1784, %v1740
        %v1786 = vsel %vm381, %v1785, %v1744
        %v1787 = vsel %vm383, %v1786, %v1748
        %v1788 = vsel %vm385, %v1787, %v1752
        %v1789 = vsel %vm373, %v1698, %v1756
        %v1790 = vsel %vm375, %v1789, %v1760
        %v1791 = vsel %vm377, %v1790, %v1764
        %v1792 = vsel %vm379, %v1791, %v1768
        %v1793 = vsel %vm381, %v1792, %v1772
        %v1794 = vsel %vm383, %v1793, %v1776
        %v1795 = vsel %vm385, %v1794, %v1780
        %1796 = vrot.lane.b32.xlu0 %v1564, 127
        %v1797 = vpop.permute.xlu0 %1796
        %1798 = vrot.lane.b32.xlu0 %v1566, 127
        %v1799 = vpop.permute.xlu0 %1798
        %1800 = vrot.lane.b32.xlu0 %v1569, 127
        %v1801 = vpop.permute.xlu0 %1800
        %1802 = vrot.lane.b32.xlu0 %v1571, 127
        %v1803 = vpop.permute.xlu0 %1802
        %1804 = vrot.lane.b32.xlu0 %v1574, 127
        %v1805 = vpop.permute.xlu0 %1804
        %1806 = vrot.lane.b32.xlu0 %v1576, 127
        %v1807 = vpop.permute.xlu0 %1806
        %1808 = vrot.lane.b32.xlu0 %v1579, 127
        %v1809 = vpop.permute.xlu0 %1808
        %1810 = vrot.lane.b32.xlu0 %v1581, 127
        %v1811 = vpop.permute.xlu0 %1810
        %v1820 = vcombine.low %v1797, %v1805
        %v1821 = vcombine.high %v1797, %v1805
        %v1823 = vunpack.c.l.s4 1983009808
        %v1824 = vunpack.c.0.s8 %v1823
        %v1825 = vlaneseq
        %v1826 = vshrl.u32 %v1825, 7
        %v1827 = vsub.s32 %v1824, %v1826
        %v1828 = vrot.slane %v1820, %v1827
        %v1830 = vunpack.c.l.s4 1983009808
        %v1831 = vunpack.c.0.s8 %v1830
        %v1832 = vlaneseq
        %v1833 = vshrl.u32 %v1832, 7
        %v1834 = vsub.s32 %v1831, %v1833
        %v1835 = vrot.slane %v1821, %v1834
        %v1836 = vcombine.low %v1801, %v1809
        %v1837 = vcombine.high %v1801, %v1809
        %v1839 = vunpack.c.l.s4 1983009808
        %v1840 = vunpack.c.0.s8 %v1839
        %v1841 = vlaneseq
        %v1842 = vshrl.u32 %v1841, 7
        %v1843 = vsub.s32 %v1840, %v1842
        %v1844 = vrot.slane %v1836, %v1843
        %v1846 = vunpack.c.l.s4 1983009808
        %v1847 = vunpack.c.0.s8 %v1846
        %v1848 = vlaneseq
        %v1849 = vshrl.u32 %v1848, 7
        %v1850 = vsub.s32 %v1847, %v1849
        %v1851 = vrot.slane %v1837, %v1850
        %v1852 = vcombine.low %v1828, %v1844
        %v1853 = vcombine.high %v1828, %v1844
        %v1855 = vunpack.c.l.s4 1934713408
        %v1856 = vunpack.c.0.s8 %v1855
        %v1857 = vlaneseq
        %v1858 = vshrl.u32 %v1857, 7
        %v1859 = vsub.s32 %v1856, %v1858
        %v1860 = vrot.slane %v1852, %v1859
        %v1862 = vunpack.c.l.s4 1934713408
        %v1863 = vunpack.c.0.s8 %v1862
        %v1864 = vlaneseq
        %v1865 = vshrl.u32 %v1864, 7
        %v1866 = vsub.s32 %v1863, %v1865
        %v1867 = vrot.slane %v1853, %v1866
        %v1868 = vcombine.low %v1835, %v1851
        %v1869 = vcombine.high %v1835, %v1851
        %v1871 = vunpack.c.l.s4 1934713408
        %v1872 = vunpack.c.0.s8 %v1871
        %v1873 = vlaneseq
        %v1874 = vshrl.u32 %v1873, 7
        %v1875 = vsub.s32 %v1872, %v1874
        %v1876 = vrot.slane %v1868, %v1875
        %v1878 = vunpack.c.l.s4 1934713408
        %v1879 = vunpack.c.0.s8 %v1878
        %v1880 = vlaneseq
        %v1881 = vshrl.u32 %v1880, 7
        %v1882 = vsub.s32 %v1879, %v1881
        %v1883 = vrot.slane %v1869, %v1882
        %v1884 = vcombine.high %v1860, 0.0
        %v1885 = vcombine.high %v1867, 0.0
        %v1886 = vcombine.high %v1876, 0.0
        %v1887 = vcombine.high %v1883, 0.0
        %v1888 = vcombine.low %v1799, %v1807
        %v1889 = vcombine.high %v1799, %v1807
        %v1891 = vunpack.c.l.s4 1983009808
        %v1892 = vunpack.c.0.s8 %v1891
        %v1893 = vlaneseq
        %v1894 = vshrl.u32 %v1893, 7
        %v1895 = vsub.s32 %v1892, %v1894
        %v1896 = vrot.slane %v1888, %v1895
        %v1898 = vunpack.c.l.s4 1983009808
        %v1899 = vunpack.c.0.s8 %v1898
        %v1900 = vlaneseq
        %v1901 = vshrl.u32 %v1900, 7
        %v1902 = vsub.s32 %v1899, %v1901
        %v1903 = vrot.slane %v1889, %v1902
        %v1904 = vcombine.low %v1803, %v1811
        %v1905 = vcombine.high %v1803, %v1811
        %v1907 = vunpack.c.l.s4 1983009808
        %v1908 = vunpack.c.0.s8 %v1907
        %v1909 = vlaneseq
        %v1910 = vshrl.u32 %v1909, 7
        %v1911 = vsub.s32 %v1908, %v1910
        %v1912 = vrot.slane %v1904, %v1911
        %v1914 = vunpack.c.l.s4 1983009808
        %v1915 = vunpack.c.0.s8 %v1914
        %v1916 = vlaneseq
        %v1917 = vshrl.u32 %v1916, 7
        %v1918 = vsub.s32 %v1915, %v1917
        %v1919 = vrot.slane %v1905, %v1918
        %v1920 = vcombine.low %v1896, %v1912
        %v1921 = vcombine.high %v1896, %v1912
        %v1923 = vunpack.c.l.s4 1934713408
        %v1924 = vunpack.c.0.s8 %v1923
        %v1925 = vlaneseq
        %v1926 = vshrl.u32 %v1925, 7
        %v1927 = vsub.s32 %v1924, %v1926
        %v1928 = vrot.slane %v1920, %v1927
        %v1930 = vunpack.c.l.s4 1934713408
        %v1931 = vunpack.c.0.s8 %v1930
        %v1932 = vlaneseq
        %v1933 = vshrl.u32 %v1932, 7
        %v1934 = vsub.s32 %v1931, %v1933
        %v1935 = vrot.slane %v1921, %v1934
        %v1936 = vcombine.low %v1903, %v1919
        %v1937 = vcombine.high %v1903, %v1919
        %v1939 = vunpack.c.l.s4 1934713408
        %v1940 = vunpack.c.0.s8 %v1939
        %v1941 = vlaneseq
        %v1942 = vshrl.u32 %v1941, 7
        %v1943 = vsub.s32 %v1940, %v1942
        %v1944 = vrot.slane %v1936, %v1943
        %v1946 = vunpack.c.l.s4 1934713408
        %v1947 = vunpack.c.0.s8 %v1946
        %v1948 = vlaneseq
        %v1949 = vshrl.u32 %v1948, 7
        %v1950 = vsub.s32 %v1947, %v1949
        %v1951 = vrot.slane %v1937, %v1950
        %v1952 = vcombine.high %v1928, 0.0
        %v1953 = vcombine.high %v1935, 0.0
        %v1954 = vcombine.high %v1944, 0.0
        %v1955 = vcombine.high %v1951, 0.0
        %1957 = vrot.lane.b32.xlu0 %v1884, 16
        %v1958 = vpop.permute.xlu0 %1957
        %1961 = vrot.lane.b32.xlu0 %v1867, 32
        %v1962 = vpop.permute.xlu0 %1961
        %1965 = vrot.lane.b32.xlu0 %v1885, 48
        %v1966 = vpop.permute.xlu0 %1965
        %1969 = vrot.lane.b32.xlu0 %v1876, 64
        %v1970 = vpop.permute.xlu0 %1969
        %1973 = vrot.lane.b32.xlu0 %v1886, 80
        %v1974 = vpop.permute.xlu0 %1973
        %1977 = vrot.lane.b32.xlu0 %v1883, 96
        %v1978 = vpop.permute.xlu0 %1977
        %1981 = vrot.lane.b32.xlu0 %v1887, 112
        %v1982 = vpop.permute.xlu0 %1981
        %1985 = vrot.lane.b32.xlu0 %v1952, 16
        %v1986 = vpop.permute.xlu0 %1985
        %1989 = vrot.lane.b32.xlu0 %v1935, 32
        %v1990 = vpop.permute.xlu0 %1989
        %1993 = vrot.lane.b32.xlu0 %v1953, 48
        %v1994 = vpop.permute.xlu0 %1993
        %1997 = vrot.lane.b32.xlu0 %v1944, 64
        %v1998 = vpop.permute.xlu0 %1997
        %2001 = vrot.lane.b32.xlu0 %v1954, 80
        %v2002 = vpop.permute.xlu0 %2001
        %2005 = vrot.lane.b32.xlu0 %v1951, 96
        %v2006 = vpop.permute.xlu0 %2005
        %2009 = vrot.lane.b32.xlu0 %v1955, 112
        %v2010 = vpop.permute.xlu0 %2009
        %v2012 = vsel %vm373, %v1860, %v1958
        %v2013 = vsel %vm375, %v2012, %v1962
        %v2014 = vsel %vm377, %v2013, %v1966
        %v2015 = vsel %vm379, %v2014, %v1970
        %v2016 = vsel %vm381, %v2015, %v1974
        %v2017 = vsel %vm383, %v2016, %v1978
        %v2018 = vsel %vm385, %v2017, %v1982
        %v2019 = vsel %vm373, %v1928, %v1986
        %v2020 = vsel %vm375, %v2019, %v1990
        %v2021 = vsel %vm377, %v2020, %v1994
        %v2022 = vsel %vm379, %v2021, %v1998
        %v2023 = vsel %vm381, %v2022, %v2002
        %v2024 = vsel %vm383, %v2023, %v2006
        %v2025 = vsel %vm385, %v2024, %v2010
        %2026 = vrot.lane.b32.xlu0 %v1564, 126
        %v2027 = vpop.permute.xlu0 %2026
        %2028 = vrot.lane.b32.xlu0 %v1566, 126
        %v2029 = vpop.permute.xlu0 %2028
        %2030 = vrot.lane.b32.xlu0 %v1569, 126
        %v2031 = vpop.permute.xlu0 %2030
        %2032 = vrot.lane.b32.xlu0 %v1571, 126
        %v2033 = vpop.permute.xlu0 %2032
        %2034 = vrot.lane.b32.xlu0 %v1574, 126
        %v2035 = vpop.permute.xlu0 %2034
        %2036 = vrot.lane.b32.xlu0 %v1576, 126
        %v2037 = vpop.permute.xlu0 %2036
        %2038 = vrot.lane.b32.xlu0 %v1579, 126
        %v2039 = vpop.permute.xlu0 %2038
        %2040 = vrot.lane.b32.xlu0 %v1581, 126
        %v2041 = vpop.permute.xlu0 %2040
        %v2050 = vcombine.low %v2027, %v2035
        %v2051 = vcombine.high %v2027, %v2035
        %v2053 = vunpack.c.l.s4 1983009808
        %v2054 = vunpack.c.0.s8 %v2053
        %v2055 = vlaneseq
        %v2056 = vshrl.u32 %v2055, 7
        %v2057 = vsub.s32 %v2054, %v2056
        %v2058 = vrot.slane %v2050, %v2057
        %v2060 = vunpack.c.l.s4 1983009808
        %v2061 = vunpack.c.0.s8 %v2060
        %v2062 = vlaneseq
        %v2063 = vshrl.u32 %v2062, 7
        %v2064 = vsub.s32 %v2061, %v2063
        %v2065 = vrot.slane %v2051, %v2064
        %v2066 = vcombine.low %v2031, %v2039
        %v2067 = vcombine.high %v2031, %v2039
        %v2069 = vunpack.c.l.s4 1983009808
        %v2070 = vunpack.c.0.s8 %v2069
        %v2071 = vlaneseq
        %v2072 = vshrl.u32 %v2071, 7
        %v2073 = vsub.s32 %v2070, %v2072
        %v2074 = vrot.slane %v2066, %v2073
        %v2076 = vunpack.c.l.s4 1983009808
        %v2077 = vunpack.c.0.s8 %v2076
        %v2078 = vlaneseq
        %v2079 = vshrl.u32 %v2078, 7
        %v2080 = vsub.s32 %v2077, %v2079
        %v2081 = vrot.slane %v2067, %v2080
        %v2082 = vcombine.low %v2058, %v2074
        %v2083 = vcombine.high %v2058, %v2074
        %v2085 = vunpack.c.l.s4 1934713408
        %v2086 = vunpack.c.0.s8 %v2085
        %v2087 = vlaneseq
        %v2088 = vshrl.u32 %v2087, 7
        %v2089 = vsub.s32 %v2086, %v2088
        %v2090 = vrot.slane %v2082, %v2089
        %v2092 = vunpack.c.l.s4 1934713408
        %v2093 = vunpack.c.0.s8 %v2092
        %v2094 = vlaneseq
        %v2095 = vshrl.u32 %v2094, 7
        %v2096 = vsub.s32 %v2093, %v2095
        %v2097 = vrot.slane %v2083, %v2096
        %v2098 = vcombine.low %v2065, %v2081
        %v2099 = vcombine.high %v2065, %v2081
        %v2101 = vunpack.c.l.s4 1934713408
        %v2102 = vunpack.c.0.s8 %v2101
        %v2103 = vlaneseq
        %v2104 = vshrl.u32 %v2103, 7
        %v2105 = vsub.s32 %v2102, %v2104
        %v2106 = vrot.slane %v2098, %v2105
        %v2108 = vunpack.c.l.s4 1934713408
        %v2109 = vunpack.c.0.s8 %v2108
        %v2110 = vlaneseq
        %v2111 = vshrl.u32 %v2110, 7
        %v2112 = vsub.s32 %v2109, %v2111
        %v2113 = vrot.slane %v2099, %v2112
        %v2114 = vcombine.high %v2090, 0.0
        %v2115 = vcombine.high %v2097, 0.0
        %v2116 = vcombine.high %v2106, 0.0
        %v2117 = vcombine.high %v2113, 0.0
        %v2118 = vcombine.low %v2029, %v2037
        %v2119 = vcombine.high %v2029, %v2037
        %v2121 = vunpack.c.l.s4 1983009808
        %v2122 = vunpack.c.0.s8 %v2121
        %v2123 = vlaneseq
        %v2124 = vshrl.u32 %v2123, 7
        %v2125 = vsub.s32 %v2122, %v2124
        %v2126 = vrot.slane %v2118, %v2125
        %v2128 = vunpack.c.l.s4 1983009808
        %v2129 = vunpack.c.0.s8 %v2128
        %v2130 = vlaneseq
        %v2131 = vshrl.u32 %v2130, 7
        %v2132 = vsub.s32 %v2129, %v2131
        %v2133 = vrot.slane %v2119, %v2132
        %v2134 = vcombine.low %v2033, %v2041
        %v2135 = vcombine.high %v2033, %v2041
        %v2137 = vunpack.c.l.s4 1983009808
        %v2138 = vunpack.c.0.s8 %v2137
        %v2139 = vlaneseq
        %v2140 = vshrl.u32 %v2139, 7
        %v2141 = vsub.s32 %v2138, %v2140
        %v2142 = vrot.slane %v2134, %v2141
        %v2144 = vunpack.c.l.s4 1983009808
        %v2145 = vunpack.c.0.s8 %v2144
        %v2146 = vlaneseq
        %v2147 = vshrl.u32 %v2146, 7
        %v2148 = vsub.s32 %v2145, %v2147
        %v2149 = vrot.slane %v2135, %v2148
        %v2150 = vcombine.low %v2126, %v2142
        %v2151 = vcombine.high %v2126, %v2142
        %v2153 = vunpack.c.l.s4 1934713408
        %v2154 = vunpack.c.0.s8 %v2153
        %v2155 = vlaneseq
        %v2156 = vshrl.u32 %v2155, 7
        %v2157 = vsub.s32 %v2154, %v2156
        %v2158 = vrot.slane %v2150, %v2157
        %v2160 = vunpack.c.l.s4 1934713408
        %v2161 = vunpack.c.0.s8 %v2160
        %v2162 = vlaneseq
        %v2163 = vshrl.u32 %v2162, 7
        %v2164 = vsub.s32 %v2161, %v2163
        %v2165 = vrot.slane %v2151, %v2164
        %v2166 = vcombine.low %v2133, %v2149
        %v2167 = vcombine.high %v2133, %v2149
        %v2169 = vunpack.c.l.s4 1934713408
        %v2170 = vunpack.c.0.s8 %v2169
        %v2171 = vlaneseq
        %v2172 = vshrl.u32 %v2171, 7
        %v2173 = vsub.s32 %v2170, %v2172
        %v2174 = vrot.slane %v2166, %v2173
        %v2176 = vunpack.c.l.s4 1934713408
        %v2177 = vunpack.c.0.s8 %v2176
        %v2178 = vlaneseq
        %v2179 = vshrl.u32 %v2178, 7
        %v2180 = vsub.s32 %v2177, %v2179
        %v2181 = vrot.slane %v2167, %v2180
        %v2182 = vcombine.high %v2158, 0.0
        %v2183 = vcombine.high %v2165, 0.0
        %v2184 = vcombine.high %v2174, 0.0
        %v2185 = vcombine.high %v2181, 0.0
        %2187 = vrot.lane.b32.xlu0 %v2114, 16
        %v2188 = vpop.permute.xlu0 %2187
        %2191 = vrot.lane.b32.xlu0 %v2097, 32
        %v2192 = vpop.permute.xlu0 %2191
        %2195 = vrot.lane.b32.xlu0 %v2115, 48
        %v2196 = vpop.permute.xlu0 %2195
        %2199 = vrot.lane.b32.xlu0 %v2106, 64
        %v2200 = vpop.permute.xlu0 %2199
        %2203 = vrot.lane.b32.xlu0 %v2116, 80
        %v2204 = vpop.permute.xlu0 %2203
        %2207 = vrot.lane.b32.xlu0 %v2113, 96
        %v2208 = vpop.permute.xlu0 %2207
        %2211 = vrot.lane.b32.xlu0 %v2117, 112
        %v2212 = vpop.permute.xlu0 %2211
        %2215 = vrot.lane.b32.xlu0 %v2182, 16
        %v2216 = vpop.permute.xlu0 %2215
        %2219 = vrot.lane.b32.xlu0 %v2165, 32
        %v2220 = vpop.permute.xlu0 %2219
        %2223 = vrot.lane.b32.xlu0 %v2183, 48
        %v2224 = vpop.permute.xlu0 %2223
        %2227 = vrot.lane.b32.xlu0 %v2174, 64
        %v2228 = vpop.permute.xlu0 %2227
        %2231 = vrot.lane.b32.xlu0 %v2184, 80
        %v2232 = vpop.permute.xlu0 %2231
        %2235 = vrot.lane.b32.xlu0 %v2181, 96
        %v2236 = vpop.permute.xlu0 %2235
        %2239 = vrot.lane.b32.xlu0 %v2185, 112
        %v2240 = vpop.permute.xlu0 %2239
        %v2242 = vsel %vm373, %v2090, %v2188
        %v2243 = vsel %vm375, %v2242, %v2192
        %v2244 = vsel %vm377, %v2243, %v2196
        %v2245 = vsel %vm379, %v2244, %v2200
        %v2246 = vsel %vm381, %v2245, %v2204
        %v2247 = vsel %vm383, %v2246, %v2208
        %v2248 = vsel %vm385, %v2247, %v2212
        %v2249 = vsel %vm373, %v2158, %v2216
        %v2250 = vsel %vm375, %v2249, %v2220
        %v2251 = vsel %vm377, %v2250, %v2224
        %v2252 = vsel %vm379, %v2251, %v2228
        %v2253 = vsel %vm381, %v2252, %v2232
        %v2254 = vsel %vm383, %v2253, %v2236
        %v2255 = vsel %vm385, %v2254, %v2240
        %v2258 = vrot.slane %v624, 4
        %v2259 = vrot.slane %v631, 4
        %v2264 = vrot.slane %v1093, 4
        %v2265 = vrot.slane %v1100, 4
        %v2270 = vrot.slane %v1553, 4
        %v2271 = vrot.slane %v1560, 4
        %v2276 = vrot.slane %v2018, 4
        %v2277 = vrot.slane %v2025, 4
        %vm2280 = vcmask 1043456
        %v2281 = vsel %vm2280, %v386, %v2258
        %v2282 = vsel %vm2280, %v393, %v2259
        %v2283 = vsel %vm2280, %v854, %v2264
        %v2284 = vsel %vm2280, %v861, %v2265
        %v2285 = vsel %vm2280, %v1323, %v2270
        %v2286 = vsel %vm2280, %v1330, %v2271
        %v2287 = vsel %vm2280, %v1788, %v2276
        %v2288 = vsel %vm2280, %v1795, %v2277
        %v2289 = vld [vmem:[%s1] sm:$0xff]
        %v2290 = vld [vmem:[%s2] sm:$0xff]
        %2292 = vset.pattern.permute.xlu0 0
        %2293 = vperm.xlu0 %2292, %v2290
        %v2294 = vpop.permute.xlu0 %2293
        %vm2296 = vcmask 293888
        %v2298 = vsel %vm2296, %v2289, 0
        %v2301 = vsel %vm2280, %v2248, 0
        %v2304 = vsel %vm2280, %v2255, 0
        %2306 = vmatprep.subr.mxu0 %v2282
        %2307 = vmatpush1.msra.mxu0 %v2281
        %2308 = vmatprep.subr.mxu0 %v2284
        %2309 = vmatpush1.msra.mxu0 %v2283
        %2310 = vmatprep.subr.mxu0 %v2286
        %2311 = vmatpush1.msra.mxu0 %v2285
        %2312 = vmatprep.subr.mxu0 %v2288
        %2313 = vmatpush1.msra.mxu0 %v2287
        %2314 = vmatprep.subr.mxu0 %v2304
        %2315 = vmatpush1.msra.mxu0 %v2301
        %2316 = vmatprep.subr.mxu0 0.0
        %2317 = vmatpush1.msra.mxu0 0.0
        %2318 = vmatprep.subr.mxu0 0.0
        %2319 = vmatpush1.msra.mxu0 0.0
        %2320 = vmatprep.subr.mxu0 0.0
        %2321 = vmatpush1.msra.mxu0 0.0
        %2322 = vmatprep.subr.mxu0 0.0
        %2323 = vmatpush1.msra.mxu0 0.0
        %2324 = vmatprep.subr.mxu0 0.0
        %2325 = vmatpush1.msra.mxu0 0.0
        %2326 = vmatprep.subr.mxu0 0.0
        %2327 = vmatpush1.msra.mxu0 0.0
        %2328 = vmatprep.subr.mxu0 0.0
        %2329 = vmatpush1.msra.mxu0 0.0
        %2330 = vmatprep.subr.mxu0 0.0
        %2331 = vmatpush1.msra.mxu0 0.0
        %2332 = vmatprep.subr.mxu0 0.0
        %2333 = vmatpush1.msra.mxu0 0.0
        %2334 = vmatprep.subr.mxu0 0.0
        %2335 = vmatpush1.msra.mxu0 0.0
        %2336 = vmatprep.subr.mxu0 0.0
        %2337 = vmatpush1.msra.mxu0 0.0
        %2338 = vmatprep.subr.mxu0 0.0
        %2339 = vmatpush1.msra.mxu0 0.0
        %2340 = vmatprep.subr.mxu0 0.0
        %2341 = vmatpush1.msra.mxu0 0.0
        %2342 = vmatprep.subr.mxu0 0.0
        %2343 = vmatpush1.msra.mxu0 0.0
        %2344 = vmatprep.subr.mxu0 0.0
        %2345 = vmatpush1.msra.mxu0 0.0
        %2346 = vmatprep.subr.mxu0 0.0
        %2347 = vmatpush1.msra.mxu0 0.0
        %2348 = vmatprep.subr.mxu0 0.0
        %2349 = vmatpush1.msra.mxu0 0.0
        %2350 = vmatprep.subr.mxu0 0.0
        %2351 = vmatpush1.msra.mxu0 0.0
        %2352 = vmatprep.subr.mxu0 0.0
        %2353 = vmatpush1.msra.mxu0 0.0
        %2354 = vmatprep.subr.mxu0 0.0
        %2355 = vmatpush1.msra.mxu0 0.0
        %2356 = vmatprep.subr.mxu0 0.0
        %2357 = vmatpush1.msra.mxu0 0.0
        %2358 = vmatprep.subr.mxu0 0.0
        %2359 = vmatpush1.msra.mxu0 0.0
        %2360 = vmatprep.subr.mxu0 0.0
        %2361 = vmatpush1.msra.mxu0 0.0
        %2362 = vmatprep.subr.mxu0 0.0
        %2363 = vmatpush1.msra.mxu0 0.0
        %2364 = vmatprep.subr.mxu0 0.0
        %2365 = vmatpush1.msra.mxu0 0.0
        %2366 = vmatprep.subr.mxu0 0.0
        %2367 = vmatpush1.msra.mxu0 0.0
        %2368 = vmatprep.subr.mxu0 0.0
        %2369 = vmatpush1.msra.mxu0 0.0
        %2370 = vmatprep.mubr.f32.mxu0 0.0
        %2371 = vmatmul.mubr.f32.gmra.mrb[0].mxu0 %v2298
        %v2372 = vpop.f32.mrb[0].mxu0
        %v2373 = vadd.f32 %v2294, %v2372
        %v2374 = vpop.f32.mrb[0].mxu0
        %v2375 = vadd.f32 %v2294, %v2374
        %2376 = vdwg.mxu0
        %2377 = vst [vmem:[%s163] sm:$0xff] %v2373
        %2378 = vst [vmem:[%s163 + $0x8] sm:$0xff] %v2375
        %s2379 = sand.u32 %s93, 1
        %s2380 = scalar_lea.sflag [#allocation3], %s2379
        %s2381 = sand.u32 %s93, 1
        %s2382 = smul.addr %s2381, 16
        %s2383 = scalar_lea.vmem [#allocation2], %s2382
        // Predicated region
        $region33: #{tpu_custom_call.1} parent=31 // pred_check
          %p2384 = pneg %p103
        $region34: #{tpu_custom_call.1} parent=31 // pred_check_branch
          %2386 = sbr.rel (%p2384) target = $region36
        $region35: #{tpu_custom_call.1} parent=31 // pred_region
          %s2388 = ssub.s32 256, 256
          %2389 = vsyncadd %s2380, %s2388
          %s2390 = smul.addr %s17, 2
          %s2391 = smul.addr %s2390, 128
          %s2392 = scalar_lea.hbm %s3, %s2391
          %s2394 = sshll.u32 %s2383, 4
          %s2395 = int_to_ptr.vmem [resolvable:$true] %s2394
          %2397 = dma.vmem_to_hbm [thread:$0]  %s2395, 256, %s2392, %s2380
        $region36: #{tpu_custom_call.1} parent=31 // pred_fallthru
          _
      $region32: #{tpu_custom_call.1} parent=5 // pred_fallthru
        _
      %p2398 = scmp.le.s32.totalorder 2, %s12
      // Predicated region
      $region37: #{tpu_custom_call.1} parent=5 // pred_check
        %p2399 = pneg %p2398
      $region38: #{tpu_custom_call.1} parent=5 // pred_check_branch
        %2401 = sbr.rel (%p2399) target = $region40
      $region39: #{tpu_custom_call.1} parent=5 // pred_region
        %s2402 = ssub.s32 %s12, 2
        // Predicated region
        $region41: #{tpu_custom_call.1} parent=39 // pred_check
          %p2403 = pneg %p109
        $region42: #{tpu_custom_call.1} parent=39 // pred_check_branch
          %2405 = sbr.rel (%p2403) target = $region44
        $region43: #{tpu_custom_call.1} parent=39 // pred_region
          %s2406 = sand.u32 %s94, 1
          %s2407 = scalar_lea.sflag [#allocation3], %s2406
          %s2408 = sand.u32 %s94, 1
          %s2409 = smul.addr %s2408, 16
          %s2410 = scalar_lea.vmem [#allocation2], %s2409
          %2411 = dma.done %s2407, 256
        $region44: #{tpu_custom_call.1} parent=39 // pred_fallthru
          _
      $region40: #{tpu_custom_call.1} parent=5 // pred_fallthru
        _
    $region6: #{tpu_custom_call.1} parent=1 // loop_footer
      %s16 = sadd.s32 1, %s12
    $region7: #{tpu_custom_call.1} parent=1 // loop_footer_branch
      %11 = sbr.rel target = $region3
    $region8: #{tpu_custom_call.1} parent=1 // loop_exit
      _
    %2412 = vsyncpa [#allocation3], 1
    %s2413 = scalar_lea.sflag [#allocation3], 1
    %2414 = vsyncpa %s2413, 1

</llo_original>
